<compile_context>
chip_gen: v7x
topology: tpu7x:2x2x1
jax: 0.10.0
libtpu: 0.0.40
codegen_flags: <defaults>
</compile_context>

<pallas_src>
import functools
import math

import jax
import jax.numpy as jnp
from jax import lax
from jax.experimental import pallas as pl
from jax.experimental.pallas import tpu as pltpu


def _layer_norm(x, gain, bias, eps=1e-6):
    # matches torch: gain * (x - mean) / (x.std(unbiased=True) + eps) + bias
    mean = jnp.mean(x, axis=-1, keepdims=True)
    var = jnp.sum((x - mean) ** 2, axis=-1, keepdims=True) * (1.0 / (x.shape[-1] - 1))
    inv = pl.reciprocal(jnp.sqrt(var) + eps, approx=False)
    return gain * (x - mean) * inv + bias


def _encoder_layer_kernel(
    mask_ref, xt_ref, xf_ref,
    wqkv_ref, bqkv_ref, wo_ref, bo_ref,
    g1_ref, be1_ref,
    w1_ref, b1_ref, w2_ref, b2_ref,
    g2_ref, be2_ref,
    out_ref,
    q_s, k_s, v_s, ctx_s,
    *, heads_count, d_head, tq,
):
    D = heads_count * d_head
    qi = pl.program_id(1)

    # ---- fused QKV projection, once per batch element (query-tile axis is
    #      sequential/"arbitrary", so the bf16 scratch carry across tiles is legal).
    #      The 1/sqrt(d_head) scale is already folded into wqkv/bqkv host-side. ----
    @pl.when(qi == 0)
    def _():
        x_full = xf_ref[0].astype(jnp.bfloat16)                      # (S, D)
        qkv = (
            jnp.dot(x_full, wqkv_ref[...], preferred_element_type=jnp.float32)
            + bqkv_ref[...]
        )                                                            # (S, 3D) f32
        q_s[...] = qkv[:, 0:D].astype(jnp.bfloat16)
        k_s[...] = qkv[:, D:2 * D].astype(jnp.bfloat16)
        v_s[...] = qkv[:, 2 * D:3 * D].astype(jnp.bfloat16)

    row0 = pl.multiple_of(qi * tq, tq)
    x_tile = xt_ref[0]                                               # (TQ, D) f32 residual
    q = q_s[pl.ds(row0, tq), :]                                      # (TQ, D) bf16 (pre-scaled)
    masked = mask_ref[0] != 0                                        # (TQ, S), hoisted

    # ---- multi-head attention; each head's context written straight into bf16 scratch.
    #      Scores contract dim 1 of both operands (no K transpose). ----
    for h in range(heads_count):                                     # static unroll
        sl = slice(h * d_head, (h + 1) * d_head)
        scores = lax.dot_general(
            q[:, sl], k_s[:, sl],
            (((1,), (1,)), ((), ())),
            preferred_element_type=jnp.float32,
        )                                                            # (TQ, S)
        scores = jnp.where(masked, -1e18, scores)
        scores = scores - jnp.max(scores, axis=-1, keepdims=True)
        p = jnp.exp(scores)
        p = p * pl.reciprocal(jnp.sum(p, axis=-1, keepdims=True), approx=True)
        # TODO(synk): attention dropout omitted (identity in eval mode).
        ctx_s[:, sl] = jnp.dot(
            p.astype(jnp.bfloat16), v_s[:, sl],
            preferred_element_type=jnp.float32,
        ).astype(jnp.bfloat16)

    attn_out = (
        jnp.dot(ctx_s[...], wo_ref[...], preferred_element_type=jnp.float32)
        + bo_ref[...]
    )

    # ---- sublayer 1: residual + layer norm ----
    x1 = _layer_norm(attn_out + x_tile, g1_ref[...], be1_ref[...])

    # ---- pointwise feed-forward (dropout before ReLU is identity) ----
    hdn = jnp.dot(x1.astype(jnp.bfloat16), w1_ref[...],
                  preferred_element_type=jnp.float32) + b1_ref[...]
    hdn = jnp.maximum(hdn, 0.0)
    ffn = jnp.dot(hdn.astype(jnp.bfloat16), w2_ref[...],
                  preferred_element_type=jnp.float32) + b2_ref[...]

    # ---- sublayer 2: residual + layer norm ----
    out_ref[0] = _layer_norm(ffn + x1, g2_ref[...], be2_ref[...])


def transformer_encoder_layer(sources, sources_mask, params, *, heads_count, q_tile=512):
    B, S, D = sources.shape
    F = params["w1"].shape[1]
    assert D % heads_count == 0
    d_head = D // heads_count

    # query tile: full sequence if small, else q_tile (multiple of 256 keeps MXU M-dim full).
    tq = S if S <= q_tile else q_tile
    assert S % tq == 0, "sequence length must divide evenly into query tiles"
    nq = S // tq

    scale = 1.0 / math.sqrt(d_head)
    # Fuse Q/K/V weights, fold the attention scale into the Q columns, pre-cast matmul
    # weights to bf16 (halves weight DMA/VMEM). Biases / LayerNorm params stay f32.
    wqkv = jnp.concatenate(
        [params["wq"] * scale, params["wk"], params["wv"]], axis=1
    ).astype(jnp.bfloat16)
    bqkv = jnp.concatenate(
        [params["bq"] * scale, params["bk"], params["bv"]], axis=1
    ).astype(jnp.float32)
    wo = params["wo"].astype(jnp.bfloat16)
    w1 = params["w1"].astype(jnp.bfloat16)
    w2 = params["w2"].astype(jnp.bfloat16)

    # Mask as int8: 4x fewer DMA bytes / VMEM than f32; nonzero == masked out.
    mask_i8 = (sources_mask != 0.0).astype(jnp.int8)

    # Constant blocks: map to (0,0) every step -> single-buffer them (no wasted 2x VMEM).
    def const2d(shape):
        return pl.BlockSpec(shape, lambda b, qi: (0, 0), pipeline_mode=pl.Buffered(1))

    weight_specs = [
        const2d((D, 3 * D)), const2d((1, 3 * D)),   # wqkv, bqkv
        const2d((D, D)), const2d((1, D)),           # wo, bo
        const2d((1, D)), const2d((1, D)),           # gain1, bias1
        const2d((D, F)), const2d((1, F)),           # w1, b1
        const2d((F, D)), const2d((1, D)),           # w2, b2
        const2d((1, D)), const2d((1, D)),           # gain2, bias2
    ]

    kernel = functools.partial(
        _encoder_layer_kernel, heads_count=heads_count, d_head=d_head, tq=tq
    )

    grid_spec = pltpu.PrefetchScalarGridSpec(
        num_scalar_prefetch=0,
        grid=(B, nq),
        in_specs=[
            # mask rows for this query tile (int8, double-buffered stream)
            pl.BlockSpec((1, tq, S), lambda b, qi: (b, qi, 0)),
            # per-tile residual x (streamed)
            pl.BlockSpec((1, tq, D), lambda b, qi: (b, qi, 0)),
            # full-sequence x, only consumed at qi==0 for the QKV projection;
            # single-buffered so it doesn't cost 2x VMEM.
            pl.BlockSpec((1, S, D), lambda b, qi: (b, 0, 0),
                         pipeline_mode=pl.Buffered(1)),
        ] + weight_specs,
        out_specs=pl.BlockSpec((1, tq, D), lambda b, qi: (b, qi, 0)),
        scratch_shapes=[
            pltpu.VMEM((S, D), jnp.bfloat16),   # Q (pre-scaled), carried across query tiles
            pltpu.VMEM((S, D), jnp.bfloat16),   # K, carried across query tiles
            pltpu.VMEM((S, D), jnp.bfloat16),   # V, carried across query tiles
            pltpu.VMEM((tq, D), jnp.bfloat16),  # per-tile attention context (bf16, lane-dense)
        ],
    )

    return pl.pallas_call(
        kernel,
        out_shape=jax.ShapeDtypeStruct((B, S, D), jnp.float32),
        grid_spec=grid_spec,
        compiler_params=pltpu.CompilerParams(
            # batch axis is megacore-parallel; the query-tile axis carries the Q/K/V
            # scratches, so it must stay sequential ("arbitrary").
            dimension_semantics=("parallel", "arbitrary"),
            # <= ~56 MiB leaves headroom on v7x (64 MiB VMEM) while still allowing
            # large tiles on v5e/v6e (128 MiB).
            vmem_limit_bytes=56 * 1024 * 1024,
        ),
    )(
        mask_i8, sources, sources,
        wqkv, bqkv, wo, params["bo"],
        params["g1"], params["be1"],
        w1, params["b1"], w2, params["b2"],
        params["g2"], params["be2"],
    )


def _reference(sources, sources_mask, params, heads_count):
    # pure-JAX f32 reference mirroring the PyTorch forward exactly
    B, S, D = sources.shape
    dh = D // heads_count
    x = sources
    q = x @ params["wq"] + params["bq"]
    k = x @ params["wk"] + params["bk"]
    v = x @ params["wv"] + params["bv"]
    qh = q.reshape(B, S, heads_count, dh).transpose(0, 2, 1, 3)
    kh = k.reshape(B, S, heads_count, dh).transpose(0, 2, 1, 3)
    vh = v.reshape(B, S, heads_count, dh).transpose(0, 2, 1, 3)
    scores = jnp.einsum("bhqd,bhkd->bhqk", qh, kh) / math.sqrt(dh)
    scores = jnp.where(sources_mask[:, None, :, :] != 0.0, -1e18, scores)
    attn = jax.nn.softmax(scores, axis=-1)
    ctx = jnp.einsum("bhqk,bhkd->bhqd", attn, vh).transpose(0, 2, 1, 3).reshape(B, S, D)
    attn_out = ctx @ params["wo"] + params["bo"]

    def ln(x, g, b, eps=1e-6):
        m = x.mean(-1, keepdims=True)
        s = jnp.sqrt(((x - m) ** 2).sum(-1, keepdims=True) / (x.shape[-1] - 1))
        return g * (x - m) / (s + eps) + b

    x1 = ln(attn_out + x, params["g1"], params["be1"])
    h = jnp.maximum(x1 @ params["w1"] + params["b1"], 0.0)
    f = h @ params["w2"] + params["b2"]
    return ln(f + x1, params["g2"], params["be2"])


if __name__ == "__main__":
    B, S, D, H, F = 2, 8, 32, 4, 64

    key = jax.random.PRNGKey(0)
    keys = jax.random.split(key, 16)

    def lin(k, fan_in, fan_out):
        scale = 1.0 / math.sqrt(fan_in)
        kw, kb = jax.random.split(k)
        w = jax.random.uniform(kw, (fan_in, fan_out), jnp.float32, -scale, scale)
        b = jax.random.uniform(kb, (1, fan_out), jnp.float32, -scale, scale)
        return w, b

    wq, bq = lin(keys[0], D, D)
    wk, bk = lin(keys[1], D, D)
    wv, bv = lin(keys[2], D, D)
    wo, bo = lin(keys[3], D, D)
    w1, b1 = lin(keys[4], D, F)
    w2, b2 = lin(keys[5], F, D)
    params = dict(
        wq=wq, bq=bq, wk=wk, bk=bk, wv=wv, bv=bv, wo=wo, bo=bo,
        w1=w1, b1=b1, w2=w2, b2=b2,
        g1=jnp.ones((1, D), jnp.float32), be1=jnp.zeros((1, D), jnp.float32),
        g2=jnp.ones((1, D), jnp.float32), be2=jnp.zeros((1, D), jnp.float32),
    )

    sources = jax.random.normal(keys[6], (B, S, D), jnp.float32)
    # mask: nonzero == masked out (padding). Mask the last 2 keys of batch 1.
    mask = jnp.zeros((B, S, S), jnp.float32)
    mask = mask.at[1, :, S - 2:].set(1.0)

    out = transformer_encoder_layer(sources, mask, params, heads_count=H)
    out = jax.block_until_ready(out)

    ref = _reference(sources, mask, params, H)
    # Tolerance loosened vs. the f32 reference because matmuls use bf16 MXU inputs
    # (f32 accumulation) and the attention scale is folded into the bf16 QKV weight;
    # elementwise/softmax/LayerNorm math remains f32.
    assert jnp.allclose(out, ref, atol=5e-2, rtol=5e-2), (
        float(jnp.max(jnp.abs(out - ref)))
    )
    print("KERNEL_OK")
</pallas_src>

<mosaic_0001>
module attributes {stable_mosaic.version = 11 : i64} {
  func.func @_encoder_layer_kernel(%arg0: i32, %arg1: i32, %arg2: memref<1x8x8xi8, #tpu.memory_space<vmem>>, %arg3: memref<1x8x32xf32, #tpu.memory_space<vmem>>, %arg4: memref<1x8x32xf32, #tpu.memory_space<vmem>>, %arg5: memref<32x96xbf16, #tpu.memory_space<vmem>>, %arg6: memref<1x96xf32, #tpu.memory_space<vmem>>, %arg7: memref<32x32xbf16, #tpu.memory_space<vmem>>, %arg8: memref<1x32xf32, #tpu.memory_space<vmem>>, %arg9: memref<1x32xf32, #tpu.memory_space<vmem>>, %arg10: memref<1x32xf32, #tpu.memory_space<vmem>>, %arg11: memref<32x64xbf16, #tpu.memory_space<vmem>>, %arg12: memref<1x64xf32, #tpu.memory_space<vmem>>, %arg13: memref<64x32xbf16, #tpu.memory_space<vmem>>, %arg14: memref<1x32xf32, #tpu.memory_space<vmem>>, %arg15: memref<1x32xf32, #tpu.memory_space<vmem>>, %arg16: memref<1x32xf32, #tpu.memory_space<vmem>>, %arg17: memref<1x8x32xf32, #tpu.memory_space<vmem>>, %arg18: memref<8x32xbf16, #tpu.memory_space<vmem>>, %arg19: memref<8x32xbf16, #tpu.memory_space<vmem>>, %arg20: memref<8x32xbf16, #tpu.memory_space<vmem>>, %arg21: memref<8x32xbf16, #tpu.memory_space<vmem>>) attributes {dimension_semantics = [#tpu.dimension_semantics<parallel>, #tpu.dimension_semantics<arbitrary>], iteration_bounds = array<i64: 2, 1>, scalar_prefetch = 0 : i64, scratch_operands = 4 : i64, tpu.core_type = #tpu.core_type<tc>, window_params = [{transform_indices = @transform_0, window_bounds = array<i64: 1, 8, 8>}, {transform_indices = @transform_1, window_bounds = array<i64: 1, 8, 32>}, {pipeline_mode = #tpu.pipeline_mode<synchronous>, transform_indices = @transform_2, window_bounds = array<i64: 1, 8, 32>}, {pipeline_mode = #tpu.pipeline_mode<synchronous>, transform_indices = @transform_3, window_bounds = array<i64: 32, 96>}, {pipeline_mode = #tpu.pipeline_mode<synchronous>, transform_indices = @transform_4, window_bounds = array<i64: 1, 96>}, {pipeline_mode = #tpu.pipeline_mode<synchronous>, transform_indices = @transform_5, window_bounds = array<i64: 32, 32>}, {pipeline_mode = #tpu.pipeline_mode<synchronous>, transform_indices = @transform_6, window_bounds = array<i64: 1, 32>}, {pipeline_mode = #tpu.pipeline_mode<synchronous>, transform_indices = @transform_7, window_bounds = array<i64: 1, 32>}, {pipeline_mode = #tpu.pipeline_mode<synchronous>, transform_indices = @transform_8, window_bounds = array<i64: 1, 32>}, {pipeline_mode = #tpu.pipeline_mode<synchronous>, transform_indices = @transform_9, window_bounds = array<i64: 32, 64>}, {pipeline_mode = #tpu.pipeline_mode<synchronous>, transform_indices = @transform_10, window_bounds = array<i64: 1, 64>}, {pipeline_mode = #tpu.pipeline_mode<synchronous>, transform_indices = @transform_11, window_bounds = array<i64: 64, 32>}, {pipeline_mode = #tpu.pipeline_mode<synchronous>, transform_indices = @transform_12, window_bounds = array<i64: 1, 32>}, {pipeline_mode = #tpu.pipeline_mode<synchronous>, transform_indices = @transform_13, window_bounds = array<i64: 1, 32>}, {pipeline_mode = #tpu.pipeline_mode<synchronous>, transform_indices = @transform_14, window_bounds = array<i64: 1, 32>}, {transform_indices = @transform_15, window_bounds = array<i64: 1, 8, 32>}]} {
    %c0_i32 = arith.constant 0 : i32
    %0 = arith.cmpi eq, %arg1, %c0_i32 : i32
    %1 = arith.extui %0 : i1 to i32
    %c0_i32_0 = arith.constant 0 : i32
    %2 = arith.cmpi ne, %1, %c0_i32_0 : i32
    scf.if %2 {
      %c0_86 = arith.constant 0 : index
      %c0_87 = arith.constant 0 : index
      %c0_88 = arith.constant 0 : index
      %168 = vector.load %arg4[%c0_86, %c0_87, %c0_88] : memref<1x8x32xf32, #tpu.memory_space<vmem>>, vector<1x8x32xf32>
      %169 = vector.shape_cast %168 : vector<1x8x32xf32> to vector<8x32xf32>
      %170 = arith.truncf %169 : vector<8x32xf32> to vector<8x32xbf16>
      %c0_89 = arith.constant 0 : index
      %c0_90 = arith.constant 0 : index
      %171 = vector.load %arg5[%c0_89, %c0_90] : memref<32x96xbf16, #tpu.memory_space<vmem>>, vector<32x96xbf16>
      %cst_91 = arith.constant dense<0.000000e+00> : vector<8x96xf32>
      %172 = tpu.matmul %170, %171, %cst_91 {dimension_numbers = #tpu.dot_dimension_numbers<[1], [0], [0], [1], [0, 0, 1, 1], [], []>} : vector<8x32xbf16>, vector<32x96xbf16>, vector<8x96xf32> -> vector<8x96xf32>
      %c0_92 = arith.constant 0 : index
      %c0_93 = arith.constant 0 : index
      %173 = vector.load %arg6[%c0_92, %c0_93] : memref<1x96xf32, #tpu.memory_space<vmem>>, vector<1x96xf32>
      %174 = vector.broadcast %173 : vector<1x96xf32> to vector<8x96xf32>
      %175 = arith.addf %172, %174 : vector<8x96xf32>
      %176 = vector.extract_strided_slice %175 {offsets = [0, 0], sizes = [8, 32], strides = [1, 1]} : vector<8x96xf32> to vector<8x32xf32>
      %177 = arith.truncf %176 : vector<8x32xf32> to vector<8x32xbf16>
      %c0_94 = arith.constant 0 : index
      %c0_95 = arith.constant 0 : index
      %178 = vector.load %arg18[%c0_94, %c0_95] : memref<8x32xbf16, #tpu.memory_space<vmem>>, vector<8x32xbf16>
      tpu.vector_store %arg18[%c0_94, %c0_95], %177 {strides = array<i32>} : memref<8x32xbf16, #tpu.memory_space<vmem>>, vector<8x32xbf16>,
      %179 = vector.extract_strided_slice %175 {offsets = [0, 32], sizes = [8, 32], strides = [1, 1]} : vector<8x96xf32> to vector<8x32xf32>
      %180 = arith.truncf %179 : vector<8x32xf32> to vector<8x32xbf16>
      %c0_96 = arith.constant 0 : index
      %c0_97 = arith.constant 0 : index
      %181 = vector.load %arg19[%c0_96, %c0_97] : memref<8x32xbf16, #tpu.memory_space<vmem>>, vector<8x32xbf16>
      tpu.vector_store %arg19[%c0_96, %c0_97], %180 {strides = array<i32>} : memref<8x32xbf16, #tpu.memory_space<vmem>>, vector<8x32xbf16>,
      %182 = vector.extract_strided_slice %175 {offsets = [0, 64], sizes = [8, 32], strides = [1, 1]} : vector<8x96xf32> to vector<8x32xf32>
      %183 = arith.truncf %182 : vector<8x32xf32> to vector<8x32xbf16>
      %c0_98 = arith.constant 0 : index
      %c0_99 = arith.constant 0 : index
      %184 = vector.load %arg20[%c0_98, %c0_99] : memref<8x32xbf16, #tpu.memory_space<vmem>>, vector<8x32xbf16>
      tpu.vector_store %arg20[%c0_98, %c0_99], %183 {strides = array<i32>} : memref<8x32xbf16, #tpu.memory_space<vmem>>, vector<8x32xbf16>,
    } else {
    }
    %c8_i32 = arith.constant 8 : i32
    %3 = arith.muli %arg1, %c8_i32 : i32
    %4 = tpu.assume_multiple %3, 8 : i32
    %c0 = arith.constant 0 : index
    %c0_1 = arith.constant 0 : index
    %c0_2 = arith.constant 0 : index
    %5 = vector.load %arg3[%c0, %c0_1, %c0_2] : memref<1x8x32xf32, #tpu.memory_space<vmem>>, vector<1x8x32xf32>
    %6 = vector.shape_cast %5 : vector<1x8x32xf32> to vector<8x32xf32>
    %7 = arith.index_cast %4 : i32 to index
    %c0_3 = arith.constant 0 : index
    %8 = vector.load %arg18[%7, %c0_3] : memref<8x32xbf16, #tpu.memory_space<vmem>>, vector<8x32xbf16>
    %c0_4 = arith.constant 0 : index
    %c0_5 = arith.constant 0 : index
    %c0_6 = arith.constant 0 : index
    %9 = vector.load %arg2[%c0_4, %c0_5, %c0_6] : memref<1x8x8xi8, #tpu.memory_space<vmem>>, vector<1x8x8xi8>
    %10 = vector.shape_cast %9 : vector<1x8x8xi8> to vector<8x8xi8>
    %c0_i8 = arith.constant 0 : i8
    %11 = vector.broadcast %c0_i8 : i8 to vector<8x8xi8>
    %12 = arith.cmpi ne, %10, %11 : vector<8x8xi8>
    %13 = vector.extract_strided_slice %8 {offsets = [0, 0], sizes = [8, 8], strides = [1, 1]} : vector<8x32xbf16> to vector<8x8xbf16>
    %c0_7 = arith.constant 0 : index
    %c0_8 = arith.constant 0 : index
    %14 = vector.load %arg19[%c0_7, %c0_8] : memref<8x32xbf16, #tpu.memory_space<vmem>>, vector<8x8xbf16>
    %cst = arith.constant dense<0.000000e+00> : vector<8x8xf32>
    %15 = tpu.matmul %13, %14, %cst {dimension_numbers = #tpu.dot_dimension_numbers<[1], [1], [0], [0], [0, 0, 1, 0], [], []>} : vector<8x8xbf16>, vector<8x8xbf16>, vector<8x8xf32> -> vector<8x8xf32>
    %cst_9 = arith.constant -9.99999984E+17 : f32
    %16 = vector.broadcast %cst_9 : f32 to vector<8x8xf32>
    %17 = arith.select %12, %16, %15 : vector<8x8xi1>, vector<8x8xf32>
    %cst_10 = arith.constant dense<0xFF800000> : vector<8xf32>
    %18 = vector.multi_reduction <maximumf>, %17, %cst_10 [1] : vector<8x8xf32> to vector<8xf32>
    %19 = vector.shape_cast %18 : vector<8xf32> to vector<8x1xf32>
    %20 = vector.broadcast %19 : vector<8x1xf32> to vector<8x8xf32>
    %21 = arith.subf %17, %20 : vector<8x8xf32>
    %22 = math.exp %21 : vector<8x8xf32>
    %cst_11 = arith.constant dense<0.000000e+00> : vector<8xf32>
    %23 = vector.multi_reduction <add>, %22, %cst_11 [1] : vector<8x8xf32> to vector<8xf32>
    %24 = vector.shape_cast %23 : vector<8xf32> to vector<8x1xf32>
    %25 = tpu.reciprocal %24 {approx = true} : vector<8x1xf32> -> vector<8x1xf32>
    %26 = vector.broadcast %25 : vector<8x1xf32> to vector<8x8xf32>
    %27 = arith.mulf %22, %26 : vector<8x8xf32>
    %28 = arith.truncf %27 : vector<8x8xf32> to vector<8x8xbf16>
    %c0_12 = arith.constant 0 : index
    %c0_13 = arith.constant 0 : index
    %29 = vector.load %arg20[%c0_12, %c0_13] : memref<8x32xbf16, #tpu.memory_space<vmem>>, vector<8x8xbf16>
    %cst_14 = arith.constant dense<0.000000e+00> : vector<8x8xf32>
    %30 = tpu.matmul %28, %29, %cst_14 {dimension_numbers = #tpu.dot_dimension_numbers<[1], [0], [0], [1], [0, 0, 1, 1], [], []>} : vector<8x8xbf16>, vector<8x8xbf16>, vector<8x8xf32> -> vector<8x8xf32>
    %31 = arith.truncf %30 : vector<8x8xf32> to vector<8x8xbf16>
    %c0_15 = arith.constant 0 : index
    %c0_16 = arith.constant 0 : index
    %32 = vector.load %arg21[%c0_15, %c0_16] : memref<8x32xbf16, #tpu.memory_space<vmem>>, vector<8x8xbf16>
    tpu.vector_store %arg21[%c0_15, %c0_16], %31 {strides = array<i32>} : memref<8x32xbf16, #tpu.memory_space<vmem>>, vector<8x8xbf16>,
    %33 = vector.extract_strided_slice %8 {offsets = [0, 8], sizes = [8, 8], strides = [1, 1]} : vector<8x32xbf16> to vector<8x8xbf16>
    %c0_17 = arith.constant 0 : index
    %c8 = arith.constant 8 : index
    %34 = vector.load %arg19[%c0_17, %c8] : memref<8x32xbf16, #tpu.memory_space<vmem>>, vector<8x8xbf16>
    %cst_18 = arith.constant dense<0.000000e+00> : vector<8x8xf32>
    %35 = tpu.matmul %33, %34, %cst_18 {dimension_numbers = #tpu.dot_dimension_numbers<[1], [1], [0], [0], [0, 0, 1, 0], [], []>} : vector<8x8xbf16>, vector<8x8xbf16>, vector<8x8xf32> -> vector<8x8xf32>
    %cst_19 = arith.constant -9.99999984E+17 : f32
    %36 = vector.broadcast %cst_19 : f32 to vector<8x8xf32>
    %37 = arith.select %12, %36, %35 : vector<8x8xi1>, vector<8x8xf32>
    %cst_20 = arith.constant dense<0xFF800000> : vector<8xf32>
    %38 = vector.multi_reduction <maximumf>, %37, %cst_20 [1] : vector<8x8xf32> to vector<8xf32>
    %39 = vector.shape_cast %38 : vector<8xf32> to vector<8x1xf32>
    %40 = vector.broadcast %39 : vector<8x1xf32> to vector<8x8xf32>
    %41 = arith.subf %37, %40 : vector<8x8xf32>
    %42 = math.exp %41 : vector<8x8xf32>
    %cst_21 = arith.constant dense<0.000000e+00> : vector<8xf32>
    %43 = vector.multi_reduction <add>, %42, %cst_21 [1] : vector<8x8xf32> to vector<8xf32>
    %44 = vector.shape_cast %43 : vector<8xf32> to vector<8x1xf32>
    %45 = tpu.reciprocal %44 {approx = true} : vector<8x1xf32> -> vector<8x1xf32>
    %46 = vector.broadcast %45 : vector<8x1xf32> to vector<8x8xf32>
    %47 = arith.mulf %42, %46 : vector<8x8xf32>
    %48 = arith.truncf %47 : vector<8x8xf32> to vector<8x8xbf16>
    %c0_22 = arith.constant 0 : index
    %c8_23 = arith.constant 8 : index
    %49 = vector.load %arg20[%c0_22, %c8_23] : memref<8x32xbf16, #tpu.memory_space<vmem>>, vector<8x8xbf16>
    %cst_24 = arith.constant dense<0.000000e+00> : vector<8x8xf32>
    %50 = tpu.matmul %48, %49, %cst_24 {dimension_numbers = #tpu.dot_dimension_numbers<[1], [0], [0], [1], [0, 0, 1, 1], [], []>} : vector<8x8xbf16>, vector<8x8xbf16>, vector<8x8xf32> -> vector<8x8xf32>
    %51 = arith.truncf %50 : vector<8x8xf32> to vector<8x8xbf16>
    %c0_25 = arith.constant 0 : index
    %c8_26 = arith.constant 8 : index
    %52 = vector.load %arg21[%c0_25, %c8_26] : memref<8x32xbf16, #tpu.memory_space<vmem>>, vector<8x8xbf16>
    tpu.vector_store %arg21[%c0_25, %c8_26], %51 {strides = array<i32>} : memref<8x32xbf16, #tpu.memory_space<vmem>>, vector<8x8xbf16>,
    %53 = vector.extract_strided_slice %8 {offsets = [0, 16], sizes = [8, 8], strides = [1, 1]} : vector<8x32xbf16> to vector<8x8xbf16>
    %c0_27 = arith.constant 0 : index
    %c16 = arith.constant 16 : index
    %54 = vector.load %arg19[%c0_27, %c16] : memref<8x32xbf16, #tpu.memory_space<vmem>>, vector<8x8xbf16>
    %cst_28 = arith.constant dense<0.000000e+00> : vector<8x8xf32>
    %55 = tpu.matmul %53, %54, %cst_28 {dimension_numbers = #tpu.dot_dimension_numbers<[1], [1], [0], [0], [0, 0, 1, 0], [], []>} : vector<8x8xbf16>, vector<8x8xbf16>, vector<8x8xf32> -> vector<8x8xf32>
    %cst_29 = arith.constant -9.99999984E+17 : f32
    %56 = vector.broadcast %cst_29 : f32 to vector<8x8xf32>
    %57 = arith.select %12, %56, %55 : vector<8x8xi1>, vector<8x8xf32>
    %cst_30 = arith.constant dense<0xFF800000> : vector<8xf32>
    %58 = vector.multi_reduction <maximumf>, %57, %cst_30 [1] : vector<8x8xf32> to vector<8xf32>
    %59 = vector.shape_cast %58 : vector<8xf32> to vector<8x1xf32>
    %60 = vector.broadcast %59 : vector<8x1xf32> to vector<8x8xf32>
    %61 = arith.subf %57, %60 : vector<8x8xf32>
    %62 = math.exp %61 : vector<8x8xf32>
    %cst_31 = arith.constant dense<0.000000e+00> : vector<8xf32>
    %63 = vector.multi_reduction <add>, %62, %cst_31 [1] : vector<8x8xf32> to vector<8xf32>
    %64 = vector.shape_cast %63 : vector<8xf32> to vector<8x1xf32>
    %65 = tpu.reciprocal %64 {approx = true} : vector<8x1xf32> -> vector<8x1xf32>
    %66 = vector.broadcast %65 : vector<8x1xf32> to vector<8x8xf32>
    %67 = arith.mulf %62, %66 : vector<8x8xf32>
    %68 = arith.truncf %67 : vector<8x8xf32> to vector<8x8xbf16>
    %c0_32 = arith.constant 0 : index
    %c16_33 = arith.constant 16 : index
    %69 = vector.load %arg20[%c0_32, %c16_33] : memref<8x32xbf16, #tpu.memory_space<vmem>>, vector<8x8xbf16>
    %cst_34 = arith.constant dense<0.000000e+00> : vector<8x8xf32>
    %70 = tpu.matmul %68, %69, %cst_34 {dimension_numbers = #tpu.dot_dimension_numbers<[1], [0], [0], [1], [0, 0, 1, 1], [], []>} : vector<8x8xbf16>, vector<8x8xbf16>, vector<8x8xf32> -> vector<8x8xf32>
    %71 = arith.truncf %70 : vector<8x8xf32> to vector<8x8xbf16>
    %c0_35 = arith.constant 0 : index
    %c16_36 = arith.constant 16 : index
    %72 = vector.load %arg21[%c0_35, %c16_36] : memref<8x32xbf16, #tpu.memory_space<vmem>>, vector<8x8xbf16>
    tpu.vector_store %arg21[%c0_35, %c16_36], %71 {strides = array<i32>} : memref<8x32xbf16, #tpu.memory_space<vmem>>, vector<8x8xbf16>,
    %73 = vector.extract_strided_slice %8 {offsets = [0, 24], sizes = [8, 8], strides = [1, 1]} : vector<8x32xbf16> to vector<8x8xbf16>
    %c0_37 = arith.constant 0 : index
    %c24 = arith.constant 24 : index
    %74 = vector.load %arg19[%c0_37, %c24] : memref<8x32xbf16, #tpu.memory_space<vmem>>, vector<8x8xbf16>
    %cst_38 = arith.constant dense<0.000000e+00> : vector<8x8xf32>
    %75 = tpu.matmul %73, %74, %cst_38 {dimension_numbers = #tpu.dot_dimension_numbers<[1], [1], [0], [0], [0, 0, 1, 0], [], []>} : vector<8x8xbf16>, vector<8x8xbf16>, vector<8x8xf32> -> vector<8x8xf32>
    %cst_39 = arith.constant -9.99999984E+17 : f32
    %76 = vector.broadcast %cst_39 : f32 to vector<8x8xf32>
    %77 = arith.select %12, %76, %75 : vector<8x8xi1>, vector<8x8xf32>
    %cst_40 = arith.constant dense<0xFF800000> : vector<8xf32>
    %78 = vector.multi_reduction <maximumf>, %77, %cst_40 [1] : vector<8x8xf32> to vector<8xf32>
    %79 = vector.shape_cast %78 : vector<8xf32> to vector<8x1xf32>
    %80 = vector.broadcast %79 : vector<8x1xf32> to vector<8x8xf32>
    %81 = arith.subf %77, %80 : vector<8x8xf32>
    %82 = math.exp %81 : vector<8x8xf32>
    %cst_41 = arith.constant dense<0.000000e+00> : vector<8xf32>
    %83 = vector.multi_reduction <add>, %82, %cst_41 [1] : vector<8x8xf32> to vector<8xf32>
    %84 = vector.shape_cast %83 : vector<8xf32> to vector<8x1xf32>
    %85 = tpu.reciprocal %84 {approx = true} : vector<8x1xf32> -> vector<8x1xf32>
    %86 = vector.broadcast %85 : vector<8x1xf32> to vector<8x8xf32>
    %87 = arith.mulf %82, %86 : vector<8x8xf32>
    %88 = arith.truncf %87 : vector<8x8xf32> to vector<8x8xbf16>
    %c0_42 = arith.constant 0 : index
    %c24_43 = arith.constant 24 : index
    %89 = vector.load %arg20[%c0_42, %c24_43] : memref<8x32xbf16, #tpu.memory_space<vmem>>, vector<8x8xbf16>
    %cst_44 = arith.constant dense<0.000000e+00> : vector<8x8xf32>
    %90 = tpu.matmul %88, %89, %cst_44 {dimension_numbers = #tpu.dot_dimension_numbers<[1], [0], [0], [1], [0, 0, 1, 1], [], []>} : vector<8x8xbf16>, vector<8x8xbf16>, vector<8x8xf32> -> vector<8x8xf32>
    %91 = arith.truncf %90 : vector<8x8xf32> to vector<8x8xbf16>
    %c0_45 = arith.constant 0 : index
    %c24_46 = arith.constant 24 : index
    %92 = vector.load %arg21[%c0_45, %c24_46] : memref<8x32xbf16, #tpu.memory_space<vmem>>, vector<8x8xbf16>
    tpu.vector_store %arg21[%c0_45, %c24_46], %91 {strides = array<i32>} : memref<8x32xbf16, #tpu.memory_space<vmem>>, vector<8x8xbf16>,
    %c0_47 = arith.constant 0 : index
    %c0_48 = arith.constant 0 : index
    %93 = vector.load %arg21[%c0_47, %c0_48] : memref<8x32xbf16, #tpu.memory_space<vmem>>, vector<8x32xbf16>
    %c0_49 = arith.constant 0 : index
    %c0_50 = arith.constant 0 : index
    %94 = vector.load %arg7[%c0_49, %c0_50] : memref<32x32xbf16, #tpu.memory_space<vmem>>, vector<32x32xbf16>
    %cst_51 = arith.constant dense<0.000000e+00> : vector<8x32xf32>
    %95 = tpu.matmul %93, %94, %cst_51 {dimension_numbers = #tpu.dot_dimension_numbers<[1], [0], [0], [1], [0, 0, 1, 1], [], []>} : vector<8x32xbf16>, vector<32x32xbf16>, vector<8x32xf32> -> vector<8x32xf32>
    %c0_52 = arith.constant 0 : index
    %c0_53 = arith.constant 0 : index
    %96 = vector.load %arg8[%c0_52, %c0_53] : memref<1x32xf32, #tpu.memory_space<vmem>>, vector<1x32xf32>
    %97 = vector.broadcast %96 : vector<1x32xf32> to vector<8x32xf32>
    %98 = arith.addf %95, %97 : vector<8x32xf32>
    %99 = arith.addf %98, %6 : vector<8x32xf32>
    %c0_54 = arith.constant 0 : index
    %c0_55 = arith.constant 0 : index
    %100 = vector.load %arg9[%c0_54, %c0_55] : memref<1x32xf32, #tpu.memory_space<vmem>>, vector<1x32xf32>
    %c0_56 = arith.constant 0 : index
    %c0_57 = arith.constant 0 : index
    %101 = vector.load %arg10[%c0_56, %c0_57] : memref<1x32xf32, #tpu.memory_space<vmem>>, vector<1x32xf32>
    %cst_58 = arith.constant dense<0.000000e+00> : vector<8xf32>
    %102 = vector.multi_reduction <add>, %99, %cst_58 [1] : vector<8x32xf32> to vector<8xf32>
    %103 = vector.shape_cast %102 : vector<8xf32> to vector<8x1xf32>
    %cst_59 = arith.constant 3.200000e+01 : f32
    %104 = vector.broadcast %cst_59 : f32 to vector<8x1xf32>
    %105 = arith.divf %103, %104 : vector<8x1xf32>
    %106 = vector.broadcast %105 : vector<8x1xf32> to vector<8x32xf32>
    %107 = arith.subf %99, %106 : vector<8x32xf32>
    %108 = arith.mulf %107, %107 : vector<8x32xf32>
    %cst_60 = arith.constant dense<0.000000e+00> : vector<8xf32>
    %109 = vector.multi_reduction <add>, %108, %cst_60 [1] : vector<8x32xf32> to vector<8xf32>
    %110 = vector.shape_cast %109 : vector<8xf32> to vector<8x1xf32>
    %cst_61 = arith.constant 0.0322580636 : f32
    %111 = vector.broadcast %cst_61 : f32 to vector<8x1xf32>
    %112 = arith.mulf %110, %111 : vector<8x1xf32>
    %113 = math.sqrt %112 : vector<8x1xf32>
    %cst_62 = arith.constant 9.99999997E-7 : f32
    %114 = vector.broadcast %cst_62 : f32 to vector<8x1xf32>
    %115 = arith.addf %113, %114 : vector<8x1xf32>
    %116 = tpu.reciprocal %115 : vector<8x1xf32> -> vector<8x1xf32>
    %117 = vector.broadcast %105 : vector<8x1xf32> to vector<8x32xf32>
    %118 = arith.subf %99, %117 : vector<8x32xf32>
    %119 = vector.broadcast %100 : vector<1x32xf32> to vector<8x32xf32>
    %120 = arith.mulf %119, %118 : vector<8x32xf32>
    %121 = vector.broadcast %116 : vector<8x1xf32> to vector<8x32xf32>
    %122 = arith.mulf %120, %121 : vector<8x32xf32>
    %123 = vector.broadcast %101 : vector<1x32xf32> to vector<8x32xf32>
    %124 = arith.addf %122, %123 : vector<8x32xf32>
    %125 = arith.truncf %124 : vector<8x32xf32> to vector<8x32xbf16>
    %c0_63 = arith.constant 0 : index
    %c0_64 = arith.constant 0 : index
    %126 = vector.load %arg11[%c0_63, %c0_64] : memref<32x64xbf16, #tpu.memory_space<vmem>>, vector<32x64xbf16>
    %cst_65 = arith.constant dense<0.000000e+00> : vector<8x64xf32>
    %127 = tpu.matmul %125, %126, %cst_65 {dimension_numbers = #tpu.dot_dimension_numbers<[1], [0], [0], [1], [0, 0, 1, 1], [], []>} : vector<8x32xbf16>, vector<32x64xbf16>, vector<8x64xf32> -> vector<8x64xf32>
    %c0_66 = arith.constant 0 : index
    %c0_67 = arith.constant 0 : index
    %128 = vector.load %arg12[%c0_66, %c0_67] : memref<1x64xf32, #tpu.memory_space<vmem>>, vector<1x64xf32>
    %129 = vector.broadcast %128 : vector<1x64xf32> to vector<8x64xf32>
    %130 = arith.addf %127, %129 : vector<8x64xf32>
    %cst_68 = arith.constant 0.000000e+00 : f32
    %131 = vector.broadcast %cst_68 : f32 to vector<8x64xf32>
    %132 = arith.maximumf %130, %131 : vector<8x64xf32>
    %133 = arith.truncf %132 : vector<8x64xf32> to vector<8x64xbf16>
    %c0_69 = arith.constant 0 : index
    %c0_70 = arith.constant 0 : index
    %134 = vector.load %arg13[%c0_69, %c0_70] : memref<64x32xbf16, #tpu.memory_space<vmem>>, vector<64x32xbf16>
    %cst_71 = arith.constant dense<0.000000e+00> : vector<8x32xf32>
    %135 = tpu.matmul %133, %134, %cst_71 {dimension_numbers = #tpu.dot_dimension_numbers<[1], [0], [0], [1], [0, 0, 1, 1], [], []>} : vector<8x64xbf16>, vector<64x32xbf16>, vector<8x32xf32> -> vector<8x32xf32>
    %c0_72 = arith.constant 0 : index
    %c0_73 = arith.constant 0 : index
    %136 = vector.load %arg14[%c0_72, %c0_73] : memref<1x32xf32, #tpu.memory_space<vmem>>, vector<1x32xf32>
    %137 = vector.broadcast %136 : vector<1x32xf32> to vector<8x32xf32>
    %138 = arith.addf %135, %137 : vector<8x32xf32>
    %139 = arith.addf %138, %124 : vector<8x32xf32>
    %c0_74 = arith.constant 0 : index
    %c0_75 = arith.constant 0 : index
    %140 = vector.load %arg15[%c0_74, %c0_75] : memref<1x32xf32, #tpu.memory_space<vmem>>, vector<1x32xf32>
    %c0_76 = arith.constant 0 : index
    %c0_77 = arith.constant 0 : index
    %141 = vector.load %arg16[%c0_76, %c0_77] : memref<1x32xf32, #tpu.memory_space<vmem>>, vector<1x32xf32>
    %cst_78 = arith.constant dense<0.000000e+00> : vector<8xf32>
    %142 = vector.multi_reduction <add>, %139, %cst_78 [1] : vector<8x32xf32> to vector<8xf32>
    %143 = vector.shape_cast %142 : vector<8xf32> to vector<8x1xf32>
    %cst_79 = arith.constant 3.200000e+01 : f32
    %144 = vector.broadcast %cst_79 : f32 to vector<8x1xf32>
    %145 = arith.divf %143, %144 : vector<8x1xf32>
    %146 = vector.broadcast %145 : vector<8x1xf32> to vector<8x32xf32>
    %147 = arith.subf %139, %146 : vector<8x32xf32>
    %148 = arith.mulf %147, %147 : vector<8x32xf32>
    %cst_80 = arith.constant dense<0.000000e+00> : vector<8xf32>
    %149 = vector.multi_reduction <add>, %148, %cst_80 [1] : vector<8x32xf32> to vector<8xf32>
    %150 = vector.shape_cast %149 : vector<8xf32> to vector<8x1xf32>
    %cst_81 = arith.constant 0.0322580636 : f32
    %151 = vector.broadcast %cst_81 : f32 to vector<8x1xf32>
    %152 = arith.mulf %150, %151 : vector<8x1xf32>
    %153 = math.sqrt %152 : vector<8x1xf32>
    %cst_82 = arith.constant 9.99999997E-7 : f32
    %154 = vector.broadcast %cst_82 : f32 to vector<8x1xf32>
    %155 = arith.addf %153, %154 : vector<8x1xf32>
    %156 = tpu.reciprocal %155 : vector<8x1xf32> -> vector<8x1xf32>
    %157 = vector.broadcast %145 : vector<8x1xf32> to vector<8x32xf32>
    %158 = arith.subf %139, %157 : vector<8x32xf32>
    %159 = vector.broadcast %140 : vector<1x32xf32> to vector<8x32xf32>
    %160 = arith.mulf %159, %158 : vector<8x32xf32>
    %161 = vector.broadcast %156 : vector<8x1xf32> to vector<8x32xf32>
    %162 = arith.mulf %160, %161 : vector<8x32xf32>
    %163 = vector.broadcast %141 : vector<1x32xf32> to vector<8x32xf32>
    %164 = arith.addf %162, %163 : vector<8x32xf32>
    %c0_83 = arith.constant 0 : index
    %c0_84 = arith.constant 0 : index
    %c0_85 = arith.constant 0 : index
    %165 = vector.load %arg17[%c0_83, %c0_84, %c0_85] : memref<1x8x32xf32, #tpu.memory_space<vmem>>, vector<1x8x32xf32>
    %166 = vector.shape_cast %165 : vector<1x8x32xf32> to vector<8x32xf32>
    %167 = vector.shape_cast %164 : vector<8x32xf32> to vector<1x8x32xf32>
    tpu.vector_store %arg17[%c0_83, %c0_84, %c0_85], %167 {strides = array<i32>} : memref<1x8x32xf32, #tpu.memory_space<vmem>>, vector<1x8x32xf32>,
    return
  }
  func.func @transform_0(%arg0: i32, %arg1: i32) -> (i32, i32, i32) {
    %c0_i32 = arith.constant 0 : i32
    %c0_i32_0 = arith.constant 0 : i32
    return %arg0, %arg1, %c0_i32 : i32, i32, i32
  }
  func.func @transform_1(%arg0: i32, %arg1: i32) -> (i32, i32, i32) {
    %c0_i32 = arith.constant 0 : i32
    %c0_i32_0 = arith.constant 0 : i32
    return %arg0, %arg1, %c0_i32 : i32, i32, i32
  }
  func.func @transform_2(%arg0: i32, %arg1: i32) -> (i32, i32, i32) {
    %c0_i32 = arith.constant 0 : i32
    %c0_i32_0 = arith.constant 0 : i32
    %c0_i32_1 = arith.constant 0 : i32
    return %arg0, %c0_i32, %c0_i32_0 : i32, i32, i32
  }
  func.func @transform_3(%arg0: i32, %arg1: i32) -> (i32, i32) {
    %c0_i32 = arith.constant 0 : i32
    %c0_i32_0 = arith.constant 0 : i32
    %c0_i32_1 = arith.constant 0 : i32
    return %c0_i32, %c0_i32_0 : i32, i32
  }
  func.func @transform_4(%arg0: i32, %arg1: i32) -> (i32, i32) {
    %c0_i32 = arith.constant 0 : i32
    %c0_i32_0 = arith.constant 0 : i32
    %c0_i32_1 = arith.constant 0 : i32
    return %c0_i32, %c0_i32_0 : i32, i32
  }
  func.func @transform_5(%arg0: i32, %arg1: i32) -> (i32, i32) {
    %c0_i32 = arith.constant 0 : i32
    %c0_i32_0 = arith.constant 0 : i32
    %c0_i32_1 = arith.constant 0 : i32
    return %c0_i32, %c0_i32_0 : i32, i32
  }
  func.func @transform_6(%arg0: i32, %arg1: i32) -> (i32, i32) {
    %c0_i32 = arith.constant 0 : i32
    %c0_i32_0 = arith.constant 0 : i32
    %c0_i32_1 = arith.constant 0 : i32
    return %c0_i32, %c0_i32_0 : i32, i32
  }
  func.func @transform_7(%arg0: i32, %arg1: i32) -> (i32, i32) {
    %c0_i32 = arith.constant 0 : i32
    %c0_i32_0 = arith.constant 0 : i32
    %c0_i32_1 = arith.constant 0 : i32
    return %c0_i32, %c0_i32_0 : i32, i32
  }
  func.func @transform_8(%arg0: i32, %arg1: i32) -> (i32, i32) {
    %c0_i32 = arith.constant 0 : i32
    %c0_i32_0 = arith.constant 0 : i32
    %c0_i32_1 = arith.constant 0 : i32
    return %c0_i32, %c0_i32_0 : i32, i32
  }
  func.func @transform_9(%arg0: i32, %arg1: i32) -> (i32, i32) {
    %c0_i32 = arith.constant 0 : i32
    %c0_i32_0 = arith.constant 0 : i32
    %c0_i32_1 = arith.constant 0 : i32
    return %c0_i32, %c0_i32_0 : i32, i32
  }
  func.func @transform_10(%arg0: i32, %arg1: i32) -> (i32, i32) {
    %c0_i32 = arith.constant 0 : i32
    %c0_i32_0 = arith.constant 0 : i32
    %c0_i32_1 = arith.constant 0 : i32
    return %c0_i32, %c0_i32_0 : i32, i32
  }
  func.func @transform_11(%arg0: i32, %arg1: i32) -> (i32, i32) {
    %c0_i32 = arith.constant 0 : i32
    %c0_i32_0 = arith.constant 0 : i32
    %c0_i32_1 = arith.constant 0 : i32
    return %c0_i32, %c0_i32_0 : i32, i32
  }
  func.func @transform_12(%arg0: i32, %arg1: i32) -> (i32, i32) {
    %c0_i32 = arith.constant 0 : i32
    %c0_i32_0 = arith.constant 0 : i32
    %c0_i32_1 = arith.constant 0 : i32
    return %c0_i32, %c0_i32_0 : i32, i32
  }
  func.func @transform_13(%arg0: i32, %arg1: i32) -> (i32, i32) {
    %c0_i32 = arith.constant 0 : i32
    %c0_i32_0 = arith.constant 0 : i32
    %c0_i32_1 = arith.constant 0 : i32
    return %c0_i32, %c0_i32_0 : i32, i32
  }
  func.func @transform_14(%arg0: i32, %arg1: i32) -> (i32, i32) {
    %c0_i32 = arith.constant 0 : i32
    %c0_i32_0 = arith.constant 0 : i32
    %c0_i32_1 = arith.constant 0 : i32
    return %c0_i32, %c0_i32_0 : i32, i32
  }
  func.func @transform_15(%arg0: i32, %arg1: i32) -> (i32, i32, i32) {
    %c0_i32 = arith.constant 0 : i32
    %c0_i32_0 = arith.constant 0 : i32
    return %arg0, %arg1, %c0_i32 : i32, i32, i32
  }
}

</mosaic_0001>

<llo_original>
// kernel: tpu_custom_call.1
$region0: #{tpu_custom_call.1}
  #allocation0 [shape = 'u32[]', space=smem, size = 0x4, offset = 0x4, fixed_abs, tag = 'smem constant byte address 0x4 - core index']
  #allocation1 [shape = 'u32[144,128]{1,0:T(1,128)}', space=vmem, size = 0x12000, scoped, tag = 'internal scratch']
  #allocation2 [shape = 'bf16[8,32]{1,0:T(8,128)(2,1)}', space=vmem, size = 0x800, scoped, tag = 'scratch operand']
  #allocation3 [shape = 'bf16[8,32]{1,0:T(8,128)(2,1)}', space=vmem, size = 0x800, scoped, tag = 'scratch operand']
  #allocation4 [shape = 'bf16[8,32]{1,0:T(8,128)(2,1)}', space=vmem, size = 0x800, scoped, tag = 'scratch operand']
  #allocation5 [shape = 'bf16[8,32]{1,0:T(8,128)(2,1)}', space=vmem, size = 0x800, scoped, tag = 'scratch operand']
  %s0 = inlined_call_operand.hbm [shape: s8[2,8,8], index: 0, kind: input, shape index: {}]
  %s1 = inlined_call_operand.vmem [shape: f32[2,8,32], index: 1, kind: input, shape index: {}]
  %s2 = inlined_call_operand.vmem [shape: f32[2,8,32], index: 2, kind: input, shape index: {}]
  %s3 = inlined_call_operand.vmem [shape: bf16[32,96], index: 3, kind: input, shape index: {}]
  %s4 = inlined_call_operand.vmem [shape: f32[1,96], index: 4, kind: input, shape index: {}]
  %s5 = inlined_call_operand.hbm [shape: bf16[32,32], index: 5, kind: input, shape index: {}]
  %s6 = inlined_call_operand.vmem [shape: f32[1,32], index: 6, kind: input, shape index: {}]
  %s7 = inlined_call_operand.hbm [shape: f32[1,32], index: 7, kind: input, shape index: {}]
  %s8 = inlined_call_operand.hbm [shape: f32[1,32], index: 8, kind: input, shape index: {}]
  %s9 = inlined_call_operand.vmem [shape: bf16[32,64], index: 9, kind: input, shape index: {}]
  %s10 = inlined_call_operand.vmem [shape: f32[1,64], index: 10, kind: input, shape index: {}]
  %s11 = inlined_call_operand.vmem [shape: bf16[64,32], index: 11, kind: input, shape index: {}]
  %s12 = inlined_call_operand.vmem [shape: f32[1,32], index: 12, kind: input, shape index: {}]
  %s13 = inlined_call_operand.vmem [shape: f32[1,32], index: 13, kind: input, shape index: {}]
  %s14 = inlined_call_operand.vmem [shape: f32[1,32], index: 14, kind: input, shape index: {}]
  %s15 = inlined_call_operand.hbm [shape: f32[2,8,32], index: 15, kind: output, shape index: {}]
  %s16 = sld [smem:[#allocation0]]
  $region113: #{tpu_custom_call.1} parent=0
    _
  %s18 = ssub.s32 1, %s16
  %s19 = scalar_select 0, %s18, %s16
  $region1: #{tpu_custom_call.1} parent=0
    #allocation6 [shape = 'u8[2048]{0}', space=vmem, size = 0x800, scoped, tag = 'input window, operand 0']
    #allocation7 [shape = 's32[2]{0}', space=sflag, size = 0x8, scoped, tag = 'scoped memory for tpu_custom_call.1']
    #allocation8 [shape = 's32[2]{0}', space=sflag, size = 0x8, scoped, tag = 'scoped memory for tpu_custom_call.1']
    #allocation9 [shape = 'u8[8192]{0}', space=vmem, size = 0x2000, scoped, tag = 'input window, operand 5, single buffered']
    #allocation10 [shape = 's32[1]{0}', space=sflag, size = 0x4, scoped, tag = 'scoped memory for tpu_custom_call.1']
    #allocation11 [shape = 'u8[512]{0}', space=vmem, size = 0x400, scoped, tag = 'input window, operand 7, single buffered']
    #allocation12 [shape = 'u8[512]{0}', space=vmem, size = 0x400, scoped, tag = 'input window, operand 8, single buffered']
    #allocation13 [shape = 's32[1]{0}', space=sflag, size = 0x4, scoped, tag = 'scoped memory for tpu_custom_call.1']
    #allocation14 [shape = 'u8[8192]{0}', space=vmem, size = 0x2000, scoped, tag = 'output window, operand 0']
    %20 = vsyncpa [#allocation7], 0
    %s21 = scalar_lea.sflag [#allocation7], 1
    %22 = vsyncpa %s21, 0
    %23 = vsyncpa [#allocation10], 0
    %24 = vsyncpa [#allocation13], 0
    %25 = vsyncpa [#allocation8], 0
    %s26 = scalar_lea.sflag [#allocation8], 1
    %27 = vsyncpa %s26, 0
    loop: start=0, step=1, limit=4
    $region2: #{tpu_custom_call.1} parent=1 // loop_pre_header
      _
    $region3: #{tpu_custom_call.1} parent=1 // loop_header
      %s29 = sphi 0, %s33
      %p30 = scmp.ge.s32.totalorder %s29, 4
      %s36 = sphi 0, %s48
      %s37 = sphi 0, %s44
      %s38 = sphi 0, %s36
      %s39 = sphi 0, %s37
      %s40 = sphi 0, %s38
      %s41 = sphi 0, %s39
      %s53 = sphi 0, %s55
      %s56 = sphi 0, %s53
      %s57 = sphi 0, %s56
      %s73 = sphi 0, %s57
      %s81 = sphi 0, %s83
      %s84 = sphi 0, %s81
      %s85 = sphi 0, %s84
      %s101 = sphi 0, %s85
      %s107 = sphi 0, %s109
      %s110 = sphi 0, %s107
      %s111 = sphi 0, %s110
      %s127 = sphi 0, %s111
      %s131 = sphi 0, %s131
      %s133 = sphi 0, %s131
      %s134 = sphi 0, %s133
      %s148 = sphi 0, %s134
      %s152 = sphi 0, %s152
      %s154 = sphi 0, %s152
      %s155 = sphi 0, %s154
      %s169 = sphi 0, %s155
      %s173 = sphi 0, %s173
      %s175 = sphi 0, %s173
      %s176 = sphi 0, %s175
      %s190 = sphi 0, %s176
      %s194 = sphi 0, %s194
      %s196 = sphi 0, %s194
      %s197 = sphi 0, %s196
      %s211 = sphi 0, %s197
      %s215 = sphi 0, %s215
      %s217 = sphi 0, %s215
      %s218 = sphi 0, %s217
      %s232 = sphi 0, %s218
      %s236 = sphi 0, %s236
      %s238 = sphi 0, %s236
      %s239 = sphi 0, %s238
      %s253 = sphi 0, %s239
      %s257 = sphi 0, %s257
      %s259 = sphi 0, %s257
      %s260 = sphi 0, %s259
      %s274 = sphi 0, %s260
      %s278 = sphi 0, %s278
      %s280 = sphi 0, %s278
      %s281 = sphi 0, %s280
      %s295 = sphi 0, %s281
      %s299 = sphi 0, %s299
      %s301 = sphi 0, %s299
      %s302 = sphi 0, %s301
      %s316 = sphi 0, %s302
      %s320 = sphi 0, %s320
      %s322 = sphi 0, %s320
      %s323 = sphi 0, %s322
      %s337 = sphi 0, %s323
      %s341 = sphi 0, %s341
      %s343 = sphi 0, %s341
      %s344 = sphi 0, %s343
      %s358 = sphi 0, %s344
      %s362 = sphi 0, %s362
      %s364 = sphi 0, %s362
      %s365 = sphi 0, %s364
      %s379 = sphi 0, %s365
      %s387 = sphi 0, %s389
      %s390 = sphi 0, %s387
      %s391 = sphi 0, %s390
      %s407 = sphi 0, %s391
    $region4: #{tpu_custom_call.1} parent=1 // loop_header_branch
      %32 = sbr.rel (%p30) target = $region8
    $region5: #{tpu_custom_call.1} parent=1 // loop_body
      %s34 = ssub.s32 %s29, 1
      %s35 = ssub.s32 %s29, 2
      %s42 = sadd.s32 1, %s37
      %p43 = scmp.ge.s32.totalorder %s42, 1
      %s44 = scalar_select %p43, 0, %s42
      %s45 = sadd.s32 1, %s36
      %s46 = scalar_select %p43, %s45, %s36
      %p47 = scmp.ge.s32.totalorder %s46, 2
      %s48 = scalar_select %p47, 0, %s46
      %s49 = ssub.s32 %s36, %s48
      %s50 = ssub.s32 %s37, %s44
      %s51 = sor.u32 %s49, %s50
      %p52 = scmp.eq.s32.totalorder %s51, 0
      %s54 = sadd.s32 %s53, 1
      %s55 = scalar_select %p52, %s53, %s54
      %p58 = pneg %p52
      %p59 = scmp.eq.s32.totalorder %s29, 1
      %p60 = por %p58, %p59
      %p61 = scmp.ne.s32.totalorder %s53, %s56
      %p62 = scmp.eq.s32.totalorder %s29, 0
      %p63 = por %p61, %p62
      %p64 = scmp.ne.s32.totalorder %s53, %s56
      %p65 = scmp.eq.s32.totalorder %s34, 1
      %p66 = por %p64, %p65
      %p67 = scmp.ne.s32.totalorder %s56, %s57
      %p68 = scmp.eq.s32.totalorder %s34, 0
      %p69 = por %p67, %p68
      %p70 = scmp.ne.s32.totalorder %s56, %s57
      %p71 = scmp.eq.s32.totalorder %s35, 1
      %p72 = por %p70, %p71
      %p74 = scmp.ne.s32.totalorder %s57, %s73
      %p75 = scmp.eq.s32.totalorder %s35, 0
      %p76 = por %p74, %p75
      %s77 = ssub.s32 %s36, %s48
      %s78 = ssub.s32 %s37, %s44
      %s79 = sor.u32 %s77, %s78
      %p80 = scmp.eq.s32.totalorder %s79, 0
      %s82 = sadd.s32 %s81, 1
      %s83 = scalar_select %p80, %s81, %s82
      %p86 = pneg %p80
      %p87 = scmp.eq.s32.totalorder %s29, 1
      %p88 = por %p86, %p87
      %p89 = scmp.ne.s32.totalorder %s81, %s84
      %p90 = scmp.eq.s32.totalorder %s29, 0
      %p91 = por %p89, %p90
      %p92 = scmp.ne.s32.totalorder %s81, %s84
      %p93 = scmp.eq.s32.totalorder %s34, 1
      %p94 = por %p92, %p93
      %p95 = scmp.ne.s32.totalorder %s84, %s85
      %p96 = scmp.eq.s32.totalorder %s34, 0
      %p97 = por %p95, %p96
      %p98 = scmp.ne.s32.totalorder %s84, %s85
      %p99 = scmp.eq.s32.totalorder %s35, 1
      %p100 = por %p98, %p99
      %p102 = scmp.ne.s32.totalorder %s85, %s101
      %p103 = scmp.eq.s32.totalorder %s35, 0
      %p104 = por %p102, %p103
      %s105 = ssub.s32 %s36, %s48
      %p106 = scmp.eq.s32.totalorder %s105, 0
      %s108 = sadd.s32 %s107, 1
      %s109 = scalar_select %p106, %s107, %s108
      %p112 = pneg %p106
      %p113 = scmp.eq.s32.totalorder %s29, 1
      %p114 = por %p112, %p113
      %p115 = scmp.ne.s32.totalorder %s107, %s110
      %p116 = scmp.eq.s32.totalorder %s29, 0
      %p117 = por %p115, %p116
      %p118 = scmp.ne.s32.totalorder %s107, %s110
      %p119 = scmp.eq.s32.totalorder %s34, 1
      %p120 = por %p118, %p119
      %p121 = scmp.ne.s32.totalorder %s110, %s111
      %p122 = scmp.eq.s32.totalorder %s34, 0
      %p123 = por %p121, %p122
      %p124 = scmp.ne.s32.totalorder %s110, %s111
      %p125 = scmp.eq.s32.totalorder %s35, 1
      %p126 = por %p124, %p125
      %p128 = scmp.ne.s32.totalorder %s111, %s127
      %p129 = scmp.eq.s32.totalorder %s35, 0
      %p130 = por %p128, %p129
      %s132 = sadd.s32 %s131, 1
      %p135 = scmp.eq.s32.totalorder %s29, 1
      %p136 = scmp.ne.s32.totalorder %s131, %s133
      %p137 = scmp.eq.s32.totalorder %s29, 0
      %p138 = por %p136, %p137
      %p139 = scmp.ne.s32.totalorder %s131, %s133
      %p140 = scmp.eq.s32.totalorder %s34, 1
      %p141 = por %p139, %p140
      %p142 = scmp.ne.s32.totalorder %s133, %s134
      %p143 = scmp.eq.s32.totalorder %s34, 0
      %p144 = por %p142, %p143
      %p145 = scmp.ne.s32.totalorder %s133, %s134
      %p146 = scmp.eq.s32.totalorder %s35, 1
      %p147 = por %p145, %p146
      %p149 = scmp.ne.s32.totalorder %s134, %s148
      %p150 = scmp.eq.s32.totalorder %s35, 0
      %p151 = por %p149, %p150
      %s153 = sadd.s32 %s152, 1
      %p156 = scmp.eq.s32.totalorder %s29, 1
      %p157 = scmp.ne.s32.totalorder %s152, %s154
      %p158 = scmp.eq.s32.totalorder %s29, 0
      %p159 = por %p157, %p158
      %p160 = scmp.ne.s32.totalorder %s152, %s154
      %p161 = scmp.eq.s32.totalorder %s34, 1
      %p162 = por %p160, %p161
      %p163 = scmp.ne.s32.totalorder %s154, %s155
      %p164 = scmp.eq.s32.totalorder %s34, 0
      %p165 = por %p163, %p164
      %p166 = scmp.ne.s32.totalorder %s154, %s155
      %p167 = scmp.eq.s32.totalorder %s35, 1
      %p168 = por %p166, %p167
      %p170 = scmp.ne.s32.totalorder %s155, %s169
      %p171 = scmp.eq.s32.totalorder %s35, 0
      %p172 = por %p170, %p171
      %s174 = sadd.s32 %s173, 1
      %p177 = scmp.eq.s32.totalorder %s29, 1
      %p178 = scmp.ne.s32.totalorder %s173, %s175
      %p179 = scmp.eq.s32.totalorder %s29, 0
      %p180 = por %p178, %p179
      %p181 = scmp.ne.s32.totalorder %s173, %s175
      %p182 = scmp.eq.s32.totalorder %s34, 1
      %p183 = por %p181, %p182
      %p184 = scmp.ne.s32.totalorder %s175, %s176
      %p185 = scmp.eq.s32.totalorder %s34, 0
      %p186 = por %p184, %p185
      %p187 = scmp.ne.s32.totalorder %s175, %s176
      %p188 = scmp.eq.s32.totalorder %s35, 1
      %p189 = por %p187, %p188
      %p191 = scmp.ne.s32.totalorder %s176, %s190
      %p192 = scmp.eq.s32.totalorder %s35, 0
      %p193 = por %p191, %p192
      %s195 = sadd.s32 %s194, 1
      %p198 = scmp.eq.s32.totalorder %s29, 1
      %p199 = scmp.ne.s32.totalorder %s194, %s196
      %p200 = scmp.eq.s32.totalorder %s29, 0
      %p201 = por %p199, %p200
      %p202 = scmp.ne.s32.totalorder %s194, %s196
      %p203 = scmp.eq.s32.totalorder %s34, 1
      %p204 = por %p202, %p203
      %p205 = scmp.ne.s32.totalorder %s196, %s197
      %p206 = scmp.eq.s32.totalorder %s34, 0
      %p207 = por %p205, %p206
      %p208 = scmp.ne.s32.totalorder %s196, %s197
      %p209 = scmp.eq.s32.totalorder %s35, 1
      %p210 = por %p208, %p209
      %p212 = scmp.ne.s32.totalorder %s197, %s211
      %p213 = scmp.eq.s32.totalorder %s35, 0
      %p214 = por %p212, %p213
      %s216 = sadd.s32 %s215, 1
      %p219 = scmp.eq.s32.totalorder %s29, 1
      %p220 = scmp.ne.s32.totalorder %s215, %s217
      %p221 = scmp.eq.s32.totalorder %s29, 0
      %p222 = por %p220, %p221
      %p223 = scmp.ne.s32.totalorder %s215, %s217
      %p224 = scmp.eq.s32.totalorder %s34, 1
      %p225 = por %p223, %p224
      %p226 = scmp.ne.s32.totalorder %s217, %s218
      %p227 = scmp.eq.s32.totalorder %s34, 0
      %p228 = por %p226, %p227
      %p229 = scmp.ne.s32.totalorder %s217, %s218
      %p230 = scmp.eq.s32.totalorder %s35, 1
      %p231 = por %p229, %p230
      %p233 = scmp.ne.s32.totalorder %s218, %s232
      %p234 = scmp.eq.s32.totalorder %s35, 0
      %p235 = por %p233, %p234
      %s237 = sadd.s32 %s236, 1
      %p240 = scmp.eq.s32.totalorder %s29, 1
      %p241 = scmp.ne.s32.totalorder %s236, %s238
      %p242 = scmp.eq.s32.totalorder %s29, 0
      %p243 = por %p241, %p242
      %p244 = scmp.ne.s32.totalorder %s236, %s238
      %p245 = scmp.eq.s32.totalorder %s34, 1
      %p246 = por %p244, %p245
      %p247 = scmp.ne.s32.totalorder %s238, %s239
      %p248 = scmp.eq.s32.totalorder %s34, 0
      %p249 = por %p247, %p248
      %p250 = scmp.ne.s32.totalorder %s238, %s239
      %p251 = scmp.eq.s32.totalorder %s35, 1
      %p252 = por %p250, %p251
      %p254 = scmp.ne.s32.totalorder %s239, %s253
      %p255 = scmp.eq.s32.totalorder %s35, 0
      %p256 = por %p254, %p255
      %s258 = sadd.s32 %s257, 1
      %p261 = scmp.eq.s32.totalorder %s29, 1
      %p262 = scmp.ne.s32.totalorder %s257, %s259
      %p263 = scmp.eq.s32.totalorder %s29, 0
      %p264 = por %p262, %p263
      %p265 = scmp.ne.s32.totalorder %s257, %s259
      %p266 = scmp.eq.s32.totalorder %s34, 1
      %p267 = por %p265, %p266
      %p268 = scmp.ne.s32.totalorder %s259, %s260
      %p269 = scmp.eq.s32.totalorder %s34, 0
      %p270 = por %p268, %p269
      %p271 = scmp.ne.s32.totalorder %s259, %s260
      %p272 = scmp.eq.s32.totalorder %s35, 1
      %p273 = por %p271, %p272
      %p275 = scmp.ne.s32.totalorder %s260, %s274
      %p276 = scmp.eq.s32.totalorder %s35, 0
      %p277 = por %p275, %p276
      %s279 = sadd.s32 %s278, 1
      %p282 = scmp.eq.s32.totalorder %s29, 1
      %p283 = scmp.ne.s32.totalorder %s278, %s280
      %p284 = scmp.eq.s32.totalorder %s29, 0
      %p285 = por %p283, %p284
      %p286 = scmp.ne.s32.totalorder %s278, %s280
      %p287 = scmp.eq.s32.totalorder %s34, 1
      %p288 = por %p286, %p287
      %p289 = scmp.ne.s32.totalorder %s280, %s281
      %p290 = scmp.eq.s32.totalorder %s34, 0
      %p291 = por %p289, %p290
      %p292 = scmp.ne.s32.totalorder %s280, %s281
      %p293 = scmp.eq.s32.totalorder %s35, 1
      %p294 = por %p292, %p293
      %p296 = scmp.ne.s32.totalorder %s281, %s295
      %p297 = scmp.eq.s32.totalorder %s35, 0
      %p298 = por %p296, %p297
      %s300 = sadd.s32 %s299, 1
      %p303 = scmp.eq.s32.totalorder %s29, 1
      %p304 = scmp.ne.s32.totalorder %s299, %s301
      %p305 = scmp.eq.s32.totalorder %s29, 0
      %p306 = por %p304, %p305
      %p307 = scmp.ne.s32.totalorder %s299, %s301
      %p308 = scmp.eq.s32.totalorder %s34, 1
      %p309 = por %p307, %p308
      %p310 = scmp.ne.s32.totalorder %s301, %s302
      %p311 = scmp.eq.s32.totalorder %s34, 0
      %p312 = por %p310, %p311
      %p313 = scmp.ne.s32.totalorder %s301, %s302
      %p314 = scmp.eq.s32.totalorder %s35, 1
      %p315 = por %p313, %p314
      %p317 = scmp.ne.s32.totalorder %s302, %s316
      %p318 = scmp.eq.s32.totalorder %s35, 0
      %p319 = por %p317, %p318
      %s321 = sadd.s32 %s320, 1
      %p324 = scmp.eq.s32.totalorder %s29, 1
      %p325 = scmp.ne.s32.totalorder %s320, %s322
      %p326 = scmp.eq.s32.totalorder %s29, 0
      %p327 = por %p325, %p326
      %p328 = scmp.ne.s32.totalorder %s320, %s322
      %p329 = scmp.eq.s32.totalorder %s34, 1
      %p330 = por %p328, %p329
      %p331 = scmp.ne.s32.totalorder %s322, %s323
      %p332 = scmp.eq.s32.totalorder %s34, 0
      %p333 = por %p331, %p332
      %p334 = scmp.ne.s32.totalorder %s322, %s323
      %p335 = scmp.eq.s32.totalorder %s35, 1
      %p336 = por %p334, %p335
      %p338 = scmp.ne.s32.totalorder %s323, %s337
      %p339 = scmp.eq.s32.totalorder %s35, 0
      %p340 = por %p338, %p339
      %s342 = sadd.s32 %s341, 1
      %p345 = scmp.eq.s32.totalorder %s29, 1
      %p346 = scmp.ne.s32.totalorder %s341, %s343
      %p347 = scmp.eq.s32.totalorder %s29, 0
      %p348 = por %p346, %p347
      %p349 = scmp.ne.s32.totalorder %s341, %s343
      %p350 = scmp.eq.s32.totalorder %s34, 1
      %p351 = por %p349, %p350
      %p352 = scmp.ne.s32.totalorder %s343, %s344
      %p353 = scmp.eq.s32.totalorder %s34, 0
      %p354 = por %p352, %p353
      %p355 = scmp.ne.s32.totalorder %s343, %s344
      %p356 = scmp.eq.s32.totalorder %s35, 1
      %p357 = por %p355, %p356
      %p359 = scmp.ne.s32.totalorder %s344, %s358
      %p360 = scmp.eq.s32.totalorder %s35, 0
      %p361 = por %p359, %p360
      %s363 = sadd.s32 %s362, 1
      %p366 = scmp.eq.s32.totalorder %s29, 1
      %p367 = scmp.ne.s32.totalorder %s362, %s364
      %p368 = scmp.eq.s32.totalorder %s29, 0
      %p369 = por %p367, %p368
      %p370 = scmp.ne.s32.totalorder %s362, %s364
      %p371 = scmp.eq.s32.totalorder %s34, 1
      %p372 = por %p370, %p371
      %p373 = scmp.ne.s32.totalorder %s364, %s365
      %p374 = scmp.eq.s32.totalorder %s34, 0
      %p375 = por %p373, %p374
      %p376 = scmp.ne.s32.totalorder %s364, %s365
      %p377 = scmp.eq.s32.totalorder %s35, 1
      %p378 = por %p376, %p377
      %p380 = scmp.ne.s32.totalorder %s365, %s379
      %p381 = scmp.eq.s32.totalorder %s35, 0
      %p382 = por %p380, %p381
      %s383 = ssub.s32 %s36, %s48
      %s384 = ssub.s32 %s37, %s44
      %s385 = sor.u32 %s383, %s384
      %p386 = scmp.eq.s32.totalorder %s385, 0
      %s388 = sadd.s32 %s387, 1
      %s389 = scalar_select %p386, %s387, %s388
      %p392 = pneg %p386
      %p393 = scmp.eq.s32.totalorder %s29, 1
      %p394 = por %p392, %p393
      %p395 = scmp.ne.s32.totalorder %s387, %s390
      %p396 = scmp.eq.s32.totalorder %s29, 0
      %p397 = por %p395, %p396
      %p398 = scmp.ne.s32.totalorder %s387, %s390
      %p399 = scmp.eq.s32.totalorder %s34, 1
      %p400 = por %p398, %p399
      %p401 = scmp.ne.s32.totalorder %s390, %s391
      %p402 = scmp.eq.s32.totalorder %s34, 0
      %p403 = por %p401, %p402
      %p404 = scmp.ne.s32.totalorder %s390, %s391
      %p405 = scmp.eq.s32.totalorder %s35, 1
      %p406 = por %p404, %p405
      %p408 = scmp.ne.s32.totalorder %s391, %s407
      %p409 = scmp.eq.s32.totalorder %s35, 0
      %p410 = por %p408, %p409
      %p411 = scmp.le.s32.totalorder 1, %s29
      %p412 = scmp.lt.s32.totalorder %s29, 3
      %p413 = pnand %p411, %p412
      %p414 = pneg %p413
      // Predicated region
      $region9: #{tpu_custom_call.1} parent=5 // pred_check
        _
      $region10: #{tpu_custom_call.1} parent=5 // pred_check_branch
        %416 = sbr.rel (%p413) target = $region12
      $region11: #{tpu_custom_call.1} parent=5 // pred_region
        %s417 = ssub.s32 %s29, 1
        // Predicated region
        $region13: #{tpu_custom_call.1} parent=11 // pred_check
          %p418 = pneg %p123
        $region14: #{tpu_custom_call.1} parent=11 // pred_check_branch
          %420 = sbr.rel (%p418) target = $region16
        $region15: #{tpu_custom_call.1} parent=11 // pred_region
          %p421 = scmp.lt.s32.totalorder %s38, 1
          %s422 = scalar_select %p421, %s38, 1
          %s423 = smul.addr %s422, 8
          %s424 = scalar_lea.vmem %s2, %s423
        $region16: #{tpu_custom_call.1} parent=11 // pred_fallthru
          _
        // Predicated region
        $region17: #{tpu_custom_call.1} parent=11 // pred_check
          %p425 = pneg %p144
        $region18: #{tpu_custom_call.1} parent=11 // pred_check_branch
          %427 = sbr.rel (%p425) target = $region20
        $region19: #{tpu_custom_call.1} parent=11 // pred_region
          _
        $region20: #{tpu_custom_call.1} parent=11 // pred_fallthru
          _
        // Predicated region
        $region21: #{tpu_custom_call.1} parent=11 // pred_check
          %p428 = pneg %p165
        $region22: #{tpu_custom_call.1} parent=11 // pred_check_branch
          %430 = sbr.rel (%p428) target = $region24
        $region23: #{tpu_custom_call.1} parent=11 // pred_region
          _
        $region24: #{tpu_custom_call.1} parent=11 // pred_fallthru
          _
        // Predicated region
        $region25: #{tpu_custom_call.1} parent=11 // pred_check
          %p431 = pneg %p186
        $region26: #{tpu_custom_call.1} parent=11 // pred_check_branch
          %433 = sbr.rel (%p431) target = $region28
        $region27: #{tpu_custom_call.1} parent=11 // pred_region
          %s435 = ssub.s32 256, 256
          %436 = vsyncadd [#allocation10], %s435
          %s437 = sshll.u32 [#allocation9], 4
          %s438 = int_to_ptr.vmem [resolvable:$true] %s437
          %443 = dma.hbm_to_vmem [thread:$0]  %s5, 256, %s438, [#allocation10], 64, 64, 4
        $region28: #{tpu_custom_call.1} parent=11 // pred_fallthru
          _
        // Predicated region
        $region29: #{tpu_custom_call.1} parent=11 // pred_check
          %p444 = pneg %p207
        $region30: #{tpu_custom_call.1} parent=11 // pred_check_branch
          %446 = sbr.rel (%p444) target = $region32
        $region31: #{tpu_custom_call.1} parent=11 // pred_region
          _
        $region32: #{tpu_custom_call.1} parent=11 // pred_fallthru
          _
        // Predicated region
        $region33: #{tpu_custom_call.1} parent=11 // pred_check
          %p447 = pneg %p228
        $region34: #{tpu_custom_call.1} parent=11 // pred_check_branch
          %449 = sbr.rel (%p447) target = $region36
        $region35: #{tpu_custom_call.1} parent=11 // pred_region
          %s451 = ssub.s32 16, 16
          %452 = vsyncadd [#allocation10], %s451
          %s454 = sshll.u32 [#allocation11], 4
          %s455 = int_to_ptr.vmem [resolvable:$true] %s454
          %457 = dma.hbm_to_vmem [thread:$0]  %s7, 16, %s455, [#allocation10]
        $region36: #{tpu_custom_call.1} parent=11 // pred_fallthru
          _
        // Predicated region
        $region37: #{tpu_custom_call.1} parent=11 // pred_check
          %p458 = pneg %p249
        $region38: #{tpu_custom_call.1} parent=11 // pred_check_branch
          %460 = sbr.rel (%p458) target = $region40
        $region39: #{tpu_custom_call.1} parent=11 // pred_region
          %s462 = ssub.s32 16, 16
          %463 = vsyncadd [#allocation13], %s462
          %s465 = sshll.u32 [#allocation12], 4
          %s466 = int_to_ptr.vmem [resolvable:$true] %s465
          %468 = dma.hbm_to_vmem [thread:$0]  %s8, 16, %s466, [#allocation13]
        $region40: #{tpu_custom_call.1} parent=11 // pred_fallthru
          _
        // Predicated region
        $region41: #{tpu_custom_call.1} parent=11 // pred_check
          %p469 = pneg %p270
        $region42: #{tpu_custom_call.1} parent=11 // pred_check_branch
          %471 = sbr.rel (%p469) target = $region44
        $region43: #{tpu_custom_call.1} parent=11 // pred_region
          _
        $region44: #{tpu_custom_call.1} parent=11 // pred_fallthru
          _
        // Predicated region
        $region45: #{tpu_custom_call.1} parent=11 // pred_check
          %p472 = pneg %p291
        $region46: #{tpu_custom_call.1} parent=11 // pred_check_branch
          %474 = sbr.rel (%p472) target = $region48
        $region47: #{tpu_custom_call.1} parent=11 // pred_region
          _
        $region48: #{tpu_custom_call.1} parent=11 // pred_fallthru
          _
        // Predicated region
        $region49: #{tpu_custom_call.1} parent=11 // pred_check
          %p475 = pneg %p312
        $region50: #{tpu_custom_call.1} parent=11 // pred_check_branch
          %477 = sbr.rel (%p475) target = $region52
        $region51: #{tpu_custom_call.1} parent=11 // pred_region
          _
        $region52: #{tpu_custom_call.1} parent=11 // pred_fallthru
          _
        // Predicated region
        $region53: #{tpu_custom_call.1} parent=11 // pred_check
          %p478 = pneg %p333
        $region54: #{tpu_custom_call.1} parent=11 // pred_check_branch
          %480 = sbr.rel (%p478) target = $region56
        $region55: #{tpu_custom_call.1} parent=11 // pred_region
          _
        $region56: #{tpu_custom_call.1} parent=11 // pred_fallthru
          _
        // Predicated region
        $region57: #{tpu_custom_call.1} parent=11 // pred_check
          %p481 = pneg %p354
        $region58: #{tpu_custom_call.1} parent=11 // pred_check_branch
          %483 = sbr.rel (%p481) target = $region60
        $region59: #{tpu_custom_call.1} parent=11 // pred_region
          _
        $region60: #{tpu_custom_call.1} parent=11 // pred_fallthru
          _
        // Predicated region
        $region61: #{tpu_custom_call.1} parent=11 // pred_check
          %p484 = pneg %p375
        $region62: #{tpu_custom_call.1} parent=11 // pred_check_branch
          %486 = sbr.rel (%p484) target = $region64
        $region63: #{tpu_custom_call.1} parent=11 // pred_region
          _
        $region64: #{tpu_custom_call.1} parent=11 // pred_fallthru
          _
      $region12: #{tpu_custom_call.1} parent=5 // pred_fallthru
        _
      %p487 = scmp.lt.s32.totalorder %s29, 2
      // Predicated region
      $region65: #{tpu_custom_call.1} parent=5 // pred_check
        %p488 = pneg %p487
      $region66: #{tpu_custom_call.1} parent=5 // pred_check_branch
        %490 = sbr.rel (%p488) target = $region68
      $region67: #{tpu_custom_call.1} parent=5 // pred_region
        // Predicated region
        $region69: #{tpu_custom_call.1} parent=67 // pred_check
          %p491 = pneg %p63
        $region70: #{tpu_custom_call.1} parent=67 // pred_check_branch
          %493 = sbr.rel (%p491) target = $region72
        $region71: #{tpu_custom_call.1} parent=67 // pred_region
          %s494 = sand.u32 %s53, 1
          %s495 = scalar_lea.sflag [#allocation7], %s494
          %s496 = sand.u32 %s53, 1
          %s497 = smul.addr %s496, 2
          %s498 = scalar_lea.vmem [#allocation6], %s497
          %s500 = ssub.s32 32, 32
          %501 = vsyncadd %s495, %s500
          %s502 = sadd.s32 %s37, %s36
          %s503 = smul.addr %s502, 32
          %s504 = scalar_lea.hbm %s0, %s503
          %s506 = sshll.u32 %s498, 4
          %s507 = int_to_ptr.vmem [resolvable:$true] %s506
          %509 = dma.hbm_to_vmem [thread:$0]  %s504, 32, %s507, %s495
        $region72: #{tpu_custom_call.1} parent=67 // pred_fallthru
          _
        // Predicated region
        $region73: #{tpu_custom_call.1} parent=67 // pred_check
          %p510 = pneg %p91
        $region74: #{tpu_custom_call.1} parent=67 // pred_check_branch
          %512 = sbr.rel (%p510) target = $region76
        $region75: #{tpu_custom_call.1} parent=67 // pred_region
          %p513 = scmp.lt.s32.totalorder %s36, 1
          %s514 = scalar_select %p513, %s36, 1
          %p515 = scmp.lt.s32.totalorder %s37, 0
          %s516 = scalar_select %p515, %s37, 0
          %s517 = sadd.s32 %s516, %s514
          %s518 = smul.addr %s517, 8
          %s519 = scalar_lea.vmem %s1, %s518
        $region76: #{tpu_custom_call.1} parent=67 // pred_fallthru
          _
      $region68: #{tpu_custom_call.1} parent=5 // pred_fallthru
        _
      %p520 = scmp.le.s32.totalorder 1, %s29
      %p521 = scmp.lt.s32.totalorder %s29, 3
      %p522 = pnand %p520, %p521
      %p523 = pneg %p522
      // Predicated region
      $region77: #{tpu_custom_call.1} parent=5 // pred_check
        _
      $region78: #{tpu_custom_call.1} parent=5 // pred_check_branch
        %525 = sbr.rel (%p522) target = $region80
      $region79: #{tpu_custom_call.1} parent=5 // pred_region
        %s526 = ssub.s32 %s29, 1
        %s527 = sand.u32 %s56, 1
        %s528 = scalar_lea.sflag [#allocation7], %s527
        %s529 = sand.u32 %s56, 1
        %s530 = smul.addr %s529, 2
        %s531 = scalar_lea.vmem [#allocation6], %s530
        // Predicated region
        $region81: #{tpu_custom_call.1} parent=79 // pred_check
          %p532 = pneg %p69
        $region82: #{tpu_custom_call.1} parent=79 // pred_check_branch
          %534 = sbr.rel (%p532) target = $region84
        $region83: #{tpu_custom_call.1} parent=79 // pred_region
          %535 = dma.done %s528, 32
        $region84: #{tpu_custom_call.1} parent=79 // pred_fallthru
          _
        // Predicated region
        $region85: #{tpu_custom_call.1} parent=79 // pred_check
          %p536 = pneg %p186
        $region86: #{tpu_custom_call.1} parent=79 // pred_check_branch
          %538 = sbr.rel (%p536) target = $region88
        $region87: #{tpu_custom_call.1} parent=79 // pred_region
          %539 = dma.done [#allocation10], 256
        $region88: #{tpu_custom_call.1} parent=79 // pred_fallthru
          _
        // Predicated region
        $region89: #{tpu_custom_call.1} parent=79 // pred_check
          %p540 = pneg %p228
        $region90: #{tpu_custom_call.1} parent=79 // pred_check_branch
          %542 = sbr.rel (%p540) target = $region92
        $region91: #{tpu_custom_call.1} parent=79 // pred_region
          %543 = dma.done [#allocation10], 16
        $region92: #{tpu_custom_call.1} parent=79 // pred_fallthru
          _
        // Predicated region
        $region93: #{tpu_custom_call.1} parent=79 // pred_check
          %p544 = pneg %p249
        $region94: #{tpu_custom_call.1} parent=79 // pred_check_branch
          %546 = sbr.rel (%p544) target = $region96
        $region95: #{tpu_custom_call.1} parent=79 // pred_region
          %547 = dma.done [#allocation13], 16
        $region96: #{tpu_custom_call.1} parent=79 // pred_fallthru
          _
        %s548 = sand.u32 %s56, 1
        %s549 = scalar_lea.sflag [#allocation7], %s548
        %s550 = sand.u32 %s56, 1
        %s551 = smul.addr %s550, 2
        %s552 = scalar_lea.vmem [#allocation6], %s551
        %p553 = pneg %p69
        %p554 = pneg %p66
        %p555 = scmp.lt.s32.totalorder %s38, 1
        %s556 = scalar_select %p555, %s38, 1
        %p557 = scmp.lt.s32.totalorder %s39, 0
        %s558 = scalar_select %p557, %s39, 0
        %s559 = sadd.s32 %s558, %s556
        %s560 = smul.addr %s559, 8
        %s561 = scalar_lea.vmem %s1, %s560
        %p562 = pneg %p97
        %p563 = pneg %p94
        %p564 = scmp.lt.s32.totalorder %s38, 1
        %s565 = scalar_select %p564, %s38, 1
        %s566 = smul.addr %s565, 8
        %s567 = scalar_lea.vmem %s2, %s566
        %p568 = pneg %p123
        %p569 = pneg %p120
        %p570 = pneg %p144
        %p571 = pneg %p141
        %p572 = pneg %p165
        %p573 = pneg %p162
        %p574 = pneg %p186
        %p575 = pneg %p183
        %p576 = pneg %p207
        %p577 = pneg %p204
        %p578 = pneg %p228
        %p579 = pneg %p225
        %p580 = pneg %p249
        %p581 = pneg %p246
        %p582 = pneg %p270
        %p583 = pneg %p267
        %p584 = pneg %p291
        %p585 = pneg %p288
        %p586 = pneg %p312
        %p587 = pneg %p309
        %p588 = pneg %p333
        %p589 = pneg %p330
        %p590 = pneg %p354
        %p591 = pneg %p351
        %p592 = pneg %p375
        %p593 = pneg %p372
        %p594 = pneg %p403
        %p595 = pneg %p400
        %s596 = sand.u32 %s390, 1
        %s597 = scalar_lea.sflag [#allocation8], %s596
        %s598 = sand.u32 %s390, 1
        %s599 = smul.addr %s598, 8
        %s600 = scalar_lea.vmem [#allocation14], %s599
        %p601 = scmp.lt.s32.totalorder %s38, 1
        %s602 = scalar_select %p601, %s38, 1
        %p603 = scmp.lt.s32.totalorder %s39, 0
        %s604 = scalar_select %p603, %s39, 0
        %s605 = sadd.s32 %s604, %s602
        %s606 = smul.addr %s605, 8
        %s607 = scalar_lea.vmem %s1, %s606
        %p608 = scmp.lt.s32.totalorder %s38, 1
        %s609 = scalar_select %p608, %s38, 1
        %s610 = smul.addr %s609, 8
        %s611 = scalar_lea.vmem %s2, %s610
        %p615 = scmp.eq.s32.totalorder %s39, 0
        // Predicated region
        $region97: #{tpu_custom_call.1} parent=79 // pred_check
          %p616 = pneg %p615
        $region98: #{tpu_custom_call.1} parent=79 // pred_check_branch
          %618 = sbr.rel (%p616) target = $region100
        $region99: #{tpu_custom_call.1} parent=79 // pred_region
          %v619 = vld [vmem:[%s611] sm:$0xff]
          %v620 = vpack.c.bf16 %v619, %v619
          %v621 = vld [vmem:[%s3] sm:$0xf]
          %v622 = vld [vmem:[%s3 + $0x4] sm:$0xf]
          %v623 = vld [vmem:[%s3 + $0x8] sm:$0xf]
          %v624 = vld [vmem:[%s3 + $0xc] sm:$0xf]
          %v625 = vld [vmem:[%s4] sm:$0x1]
          %v627 = vlaneseq
          %v628 = vshrl.u32 %v627, 7
          %v629 = vsub.s32 0, %v628
          %v630 = vrot.slane %v625, %v629
          %v636 = vunpack.c.l.b16 %v621
          %v637 = vunpack.c.l.b16 %v622
          %v638 = vunpack.c.l.b16 %v623
          %v639 = vunpack.c.l.b16 %v624
          %v640 = vpack.c.b16 %v637, %v636
          %v641 = vpack.c.b16 %v639, %v638
          %vm644 = vcmask 261120
          %v646 = vsel %vm644, %v620, 0
          %648 = vmatprep.subr.bf16.mxu0 0
          %649 = vmatpush1.bf16.msra.mxu0 %v640
          %650 = vmatprep.subr.bf16.mxu0 0
          %651 = vmatpush1.bf16.msra.mxu0 %v641
          %652 = vmatprep.subr.bf16.mxu0 0
          %653 = vmatpush1.bf16.msra.mxu0 0
          %654 = vmatprep.subr.bf16.mxu0 0
          %655 = vmatpush1.bf16.msra.mxu0 0
          %656 = vmatprep.subr.bf16.mxu0 0
          %657 = vmatpush1.bf16.msra.mxu0 0
          %658 = vmatprep.subr.bf16.mxu0 0
          %659 = vmatpush1.bf16.msra.mxu0 0
          %660 = vmatprep.subr.bf16.mxu0 0
          %661 = vmatpush1.bf16.msra.mxu0 0
          %662 = vmatprep.subr.bf16.mxu0 0
          %663 = vmatpush1.bf16.msra.mxu0 0
          %664 = vmatprep.subr.bf16.mxu0 0
          %665 = vmatpush1.bf16.msra.mxu0 0
          %666 = vmatprep.subr.bf16.mxu0 0
          %667 = vmatpush1.bf16.msra.mxu0 0
          %668 = vmatprep.subr.bf16.mxu0 0
          %669 = vmatpush1.bf16.msra.mxu0 0
          %670 = vmatprep.subr.bf16.mxu0 0
          %671 = vmatpush1.bf16.msra.mxu0 0
          %672 = vmatprep.subr.bf16.mxu0 0
          %673 = vmatpush1.bf16.msra.mxu0 0
          %674 = vmatprep.subr.bf16.mxu0 0
          %675 = vmatpush1.bf16.msra.mxu0 0
          %676 = vmatprep.subr.bf16.mxu0 0
          %677 = vmatpush1.bf16.msra.mxu0 0
          %678 = vmatprep.subr.bf16.mxu0 0
          %679 = vmatpush1.bf16.msra.mxu0 0
          %680 = vmatprep.mubr.bf16.mxu0 0
          %681 = vmatmul.mubr.bf16.gmra.mrb[0].mxu0 %v646
          %v682 = vpop.f32.mrb[0].mxu0
          %v683 = vadd.f32 %v630, %v682
          %v684 = vpop.f32.mrb[0].mxu0
          %v685 = vpop.f32.mrb[0].mxu0
          %v686 = vpop.f32.mrb[0].mxu0
          %687 = vdwg.mxu0
          %v688 = vpack.c.bf16 %v683, %v683
          %vm689 = vcmask 257024
          %690 = vst.msk [vmem:[#allocation2] sm:$0xf] %vm689, %v688
          %v692 = vunpack.c.l.b16 %v688
          %v693 = vpack.c.b16 %v692, %v692
          %694 = vrot.lane.b32.xlu0 %v693, 96
          %v695 = vpop.permute.xlu0 %694
          %697 = vst.msk [vmem:[#allocation3] sm:$0xf] %vm689, %v695
          %698 = vrot.lane.b32.xlu0 %v693, 64
          %v699 = vpop.permute.xlu0 %698
          %701 = vst.msk [vmem:[#allocation4] sm:$0xf] %vm689, %v699
        $region100: #{tpu_custom_call.1} parent=79 // pred_fallthru
          _
        %s702 = smul.u32 %s39, 8
        %v703 = vld [vmem:[%s607] sm:$0xff]
        %s704 = sshra.s32 %s702, 3
        %s705 = sand.u32 %s702, 7
        %s706 = smul.addr %s704, 4
        %s707 = scalar_lea.vmem [#allocation2], %s706
        %v708 = vld [vmem:[%s707] sm:$0xf]
        %v709 = vld [vmem:[%s531] sm:$0x3]
        %vm710 = vnez %v709
        %v711 = vld [vmem:[#allocation3] sm:$0xf]
        %vm712 = vcmask 64512
        %v714 = vsel %vm712, %v708, 0
        %v717 = vsel %vm712, %v711, 0
        %719 = vmatprep.subr.bf16.mxu0 0
        %720 = vmatpush1.bf16.xpose.msra.mxu0 %v717
        %721 = vmatprep.subr.bf16.mxu0 0
        %722 = vmatpush1.bf16.xpose.msra.mxu0 0
        %723 = vmatprep.subr.bf16.mxu0 0
        %724 = vmatpush1.bf16.xpose.msra.mxu0 0
        %725 = vmatprep.subr.bf16.mxu0 0
        %726 = vmatpush1.bf16.xpose.msra.mxu0 0
        %727 = vmatprep.subr.bf16.mxu0 0
        %728 = vmatpush1.bf16.xpose.msra.mxu0 0
        %729 = vmatprep.subr.bf16.mxu0 0
        %730 = vmatpush1.bf16.xpose.msra.mxu0 0
        %731 = vmatprep.subr.bf16.mxu0 0
        %732 = vmatpush1.bf16.xpose.msra.mxu0 0
        %733 = vmatprep.subr.bf16.mxu0 0
        %734 = vmatpush1.bf16.xpose.msra.mxu0 0
        %735 = vmatprep.subr.bf16.mxu0 0
        %736 = vmatpush1.bf16.xpose.msra.mxu0 0
        %737 = vmatprep.subr.bf16.mxu0 0
        %738 = vmatpush1.bf16.xpose.msra.mxu0 0
        %739 = vmatprep.subr.bf16.mxu0 0
        %740 = vmatpush1.bf16.xpose.msra.mxu0 0
        %741 = vmatprep.subr.bf16.mxu0 0
        %742 = vmatpush1.bf16.xpose.msra.mxu0 0
        %743 = vmatprep.subr.bf16.mxu0 0
        %744 = vmatpush1.bf16.xpose.msra.mxu0 0
        %745 = vmatprep.subr.bf16.mxu0 0
        %746 = vmatpush1.bf16.xpose.msra.mxu0 0
        %747 = vmatprep.subr.bf16.mxu0 0
        %748 = vmatpush1.bf16.xpose.msra.mxu0 0
        %749 = vmatprep.subr.bf16.mxu0 0
        %750 = vmatpush1.bf16.xpose.msra.mxu0 0
        %751 = vmatprep.mubr.bf16.mxu0 0
        %752 = vmatmul.mubr.bf16.gmra.mrb[0].mxu0 %v714
        %v753 = vpop.f32.mrb[0].mxu0
        %v754 = vadd.f32 0.0, %v753
        %v755 = vpop.f32.mrb[0].mxu0
        %v756 = vpop.f32.mrb[0].mxu0
        %v757 = vpop.f32.mrb[0].mxu0
        %758 = vdwg.mxu0
        %v759 = vsel %vm710, 16843009, 0
        %v760 = vunpack.c.0.s8 %v759
        %vm761 = vcmp.ne.s32.totalorder %v760, 0
        %v762 = vsel %vm761, -1e+18, %v754
        %v763 = vsel %vm712, %v762, -inf
        %764 = vmax.xlane.f32.xlu0 %v763
        %v765 = vpop.xlane.xlu0 %764
        %v766 = vsub.f32 %v762, %v765
        %v767 = vmul.f32 %v766, 1.442695
        %v768 = vpow.pop %v767
        %v769 = vsel %vm712, %v768, 0.0
        %770 = vadd.xlane.f32.xlu0 %v769
        %v771 = vpop.xlane.xlu0 %770
        %v772 = vrcp.pop %v771
        %v773 = vmul.f32 %v768, %v772
        %v774 = vpack.c.bf16 %v773, %v773
        %v775 = vld [vmem:[#allocation4] sm:$0xf]
        %v777 = vsel %vm712, %v774, 0
        %vm779 = vcmask 1043456
        %v781 = vsel %vm779, %v775, 0
        %783 = vmatprep.subr.bf16.mxu0 0
        %784 = vmatpush1.bf16.msra.mxu0 %v781
        %785 = vmatprep.subr.bf16.mxu0 0
        %786 = vmatpush1.bf16.msra.mxu0 0
        %787 = vmatprep.subr.bf16.mxu0 0
        %788 = vmatpush1.bf16.msra.mxu0 0
        %789 = vmatprep.subr.bf16.mxu0 0
        %790 = vmatpush1.bf16.msra.mxu0 0
        %791 = vmatprep.subr.bf16.mxu0 0
        %792 = vmatpush1.bf16.msra.mxu0 0
        %793 = vmatprep.subr.bf16.mxu0 0
        %794 = vmatpush1.bf16.msra.mxu0 0
        %795 = vmatprep.subr.bf16.mxu0 0
        %796 = vmatpush1.bf16.msra.mxu0 0
        %797 = vmatprep.subr.bf16.mxu0 0
        %798 = vmatpush1.bf16.msra.mxu0 0
        %799 = vmatprep.subr.bf16.mxu0 0
        %800 = vmatpush1.bf16.msra.mxu0 0
        %801 = vmatprep.subr.bf16.mxu0 0
        %802 = vmatpush1.bf16.msra.mxu0 0
        %803 = vmatprep.subr.bf16.mxu0 0
        %804 = vmatpush1.bf16.msra.mxu0 0
        %805 = vmatprep.subr.bf16.mxu0 0
        %806 = vmatpush1.bf16.msra.mxu0 0
        %807 = vmatprep.subr.bf16.mxu0 0
        %808 = vmatpush1.bf16.msra.mxu0 0
        %809 = vmatprep.subr.bf16.mxu0 0
        %810 = vmatpush1.bf16.msra.mxu0 0
        %811 = vmatprep.subr.bf16.mxu0 0
        %812 = vmatpush1.bf16.msra.mxu0 0
        %813 = vmatprep.subr.bf16.mxu0 0
        %814 = vmatpush1.bf16.msra.mxu0 0
        %815 = vmatprep.mubr.bf16.mxu0 0
        %816 = vmatmul.mubr.bf16.gmra.mrb[0].mxu0 %v777
        %v817 = vpop.f32.mrb[0].mxu0
        %v818 = vadd.f32 0.0, %v817
        %v819 = vpop.f32.mrb[0].mxu0
        %v820 = vpop.f32.mrb[0].mxu0
        %v821 = vpop.f32.mrb[0].mxu0
        %822 = vdwg.mxu0
        %v823 = vpack.c.bf16 %v818, %v818
        %vm824 = vcmask 60416
        %825 = vst.msk [vmem:[#allocation5] sm:$0xf] %vm824, %v823
        %v826 = vld [vmem:[#allocation3] sm:$0xf]
        %v828 = vunpack.c.l.b16 %v708
        %v829 = vpack.c.b16 %v828, %v828
        %830 = vrot.lane.b32.xlu0 %v829, 120
        %v831 = vpop.permute.xlu0 %830
        %v833 = vunpack.c.l.b16 %v826
        %v834 = vpack.c.b16 %v833, %v833
        %835 = vrot.lane.b32.xlu0 %v834, 120
        %v836 = vpop.permute.xlu0 %835
        %v838 = vsel %vm712, %v831, 0
        %v841 = vsel %vm712, %v836, 0
        %843 = vmatprep.subr.bf16.mxu0 0
        %844 = vmatpush1.bf16.xpose.msra.mxu0 %v841
        %845 = vmatprep.subr.bf16.mxu0 0
        %846 = vmatpush1.bf16.xpose.msra.mxu0 0
        %847 = vmatprep.subr.bf16.mxu0 0
        %848 = vmatpush1.bf16.xpose.msra.mxu0 0
        %849 = vmatprep.subr.bf16.mxu0 0
        %850 = vmatpush1.bf16.xpose.msra.mxu0 0
        %851 = vmatprep.subr.bf16.mxu0 0
        %852 = vmatpush1.bf16.xpose.msra.mxu0 0
        %853 = vmatprep.subr.bf16.mxu0 0
        %854 = vmatpush1.bf16.xpose.msra.mxu0 0
        %855 = vmatprep.subr.bf16.mxu0 0
        %856 = vmatpush1.bf16.xpose.msra.mxu0 0
        %857 = vmatprep.subr.bf16.mxu0 0
        %858 = vmatpush1.bf16.xpose.msra.mxu0 0
        %859 = vmatprep.subr.bf16.mxu0 0
        %860 = vmatpush1.bf16.xpose.msra.mxu0 0
        %861 = vmatprep.subr.bf16.mxu0 0
        %862 = vmatpush1.bf16.xpose.msra.mxu0 0
        %863 = vmatprep.subr.bf16.mxu0 0
        %864 = vmatpush1.bf16.xpose.msra.mxu0 0
        %865 = vmatprep.subr.bf16.mxu0 0
        %866 = vmatpush1.bf16.xpose.msra.mxu0 0
        %867 = vmatprep.subr.bf16.mxu0 0
        %868 = vmatpush1.bf16.xpose.msra.mxu0 0
        %869 = vmatprep.subr.bf16.mxu0 0
        %870 = vmatpush1.bf16.xpose.msra.mxu0 0
        %871 = vmatprep.subr.bf16.mxu0 0
        %872 = vmatpush1.bf16.xpose.msra.mxu0 0
        %873 = vmatprep.subr.bf16.mxu0 0
        %874 = vmatpush1.bf16.xpose.msra.mxu0 0
        %875 = vmatprep.mubr.bf16.mxu0 0
        %876 = vmatmul.mubr.bf16.gmra.mrb[0].mxu0 %v838
        %v877 = vpop.f32.mrb[0].mxu0
        %v878 = vadd.f32 0.0, %v877
        %v879 = vpop.f32.mrb[0].mxu0
        %v880 = vpop.f32.mrb[0].mxu0
        %v881 = vpop.f32.mrb[0].mxu0
        %882 = vdwg.mxu0
        %v883 = vsel %vm761, -1e+18, %v878
        %v884 = vsel %vm712, %v883, -inf
        %885 = vmax.xlane.f32.xlu0 %v884
        %v886 = vpop.xlane.xlu0 %885
        %v887 = vsub.f32 %v883, %v886
        %v888 = vmul.f32 %v887, 1.442695
        %v889 = vpow.pop %v888
        %v890 = vsel %vm712, %v889, 0.0
        %891 = vadd.xlane.f32.xlu0 %v890
        %v892 = vpop.xlane.xlu0 %891
        %v893 = vrcp.pop %v892
        %v894 = vmul.f32 %v889, %v893
        %v895 = vpack.c.bf16 %v894, %v894
        %v896 = vld [vmem:[#allocation4] sm:$0xf]
        %v898 = vunpack.c.l.b16 %v896
        %v899 = vpack.c.b16 %v898, %v898
        %900 = vrot.lane.b32.xlu0 %v899, 120
        %v901 = vpop.permute.xlu0 %900
        %v903 = vsel %vm712, %v895, 0
        %v906 = vsel %vm779, %v901, 0
        %908 = vmatprep.subr.bf16.mxu0 0
        %909 = vmatpush1.bf16.msra.mxu0 %v906
        %910 = vmatprep.subr.bf16.mxu0 0
        %911 = vmatpush1.bf16.msra.mxu0 0
        %912 = vmatprep.subr.bf16.mxu0 0
        %913 = vmatpush1.bf16.msra.mxu0 0
        %914 = vmatprep.subr.bf16.mxu0 0
        %915 = vmatpush1.bf16.msra.mxu0 0
        %916 = vmatprep.subr.bf16.mxu0 0
        %917 = vmatpush1.bf16.msra.mxu0 0
        %918 = vmatprep.subr.bf16.mxu0 0
        %919 = vmatpush1.bf16.msra.mxu0 0
        %920 = vmatprep.subr.bf16.mxu0 0
        %921 = vmatpush1.bf16.msra.mxu0 0
        %922 = vmatprep.subr.bf16.mxu0 0
        %923 = vmatpush1.bf16.msra.mxu0 0
        %924 = vmatprep.subr.bf16.mxu0 0
        %925 = vmatpush1.bf16.msra.mxu0 0
        %926 = vmatprep.subr.bf16.mxu0 0
        %927 = vmatpush1.bf16.msra.mxu0 0
        %928 = vmatprep.subr.bf16.mxu0 0
        %929 = vmatpush1.bf16.msra.mxu0 0
        %930 = vmatprep.subr.bf16.mxu0 0
        %931 = vmatpush1.bf16.msra.mxu0 0
        %932 = vmatprep.subr.bf16.mxu0 0
        %933 = vmatpush1.bf16.msra.mxu0 0
        %934 = vmatprep.subr.bf16.mxu0 0
        %935 = vmatpush1.bf16.msra.mxu0 0
        %936 = vmatprep.subr.bf16.mxu0 0
        %937 = vmatpush1.bf16.msra.mxu0 0
        %938 = vmatprep.subr.bf16.mxu0 0
        %939 = vmatpush1.bf16.msra.mxu0 0
        %940 = vmatprep.mubr.bf16.mxu0 0
        %941 = vmatmul.mubr.bf16.gmra.mrb[0].mxu0 %v903
        %v942 = vpop.f32.mrb[0].mxu0
        %v943 = vadd.f32 0.0, %v942
        %v944 = vpop.f32.mrb[0].mxu0
        %v945 = vpop.f32.mrb[0].mxu0
        %v946 = vpop.f32.mrb[0].mxu0
        %947 = vdwg.mxu0
        %v948 = vpack.c.bf16 %v943, %v943
        %v950 = vunpack.c.l.b16 %v948
        %v951 = vpack.c.b16 %v950, %v950
        %952 = vrot.lane.b32.xlu0 %v951, 8
        %v953 = vpop.permute.xlu0 %952
        %vm955 = vcmask 126016
        %956 = vst.msk [vmem:[#allocation5] sm:$0xf] %vm955, %v953
        %v957 = vld [vmem:[#allocation3] sm:$0xf]
        %958 = vrot.lane.b32.xlu0 %v829, 112
        %v959 = vpop.permute.xlu0 %958
        %v961 = vunpack.c.l.b16 %v957
        %v962 = vpack.c.b16 %v961, %v961
        %963 = vrot.lane.b32.xlu0 %v962, 112
        %v964 = vpop.permute.xlu0 %963
        %v966 = vsel %vm712, %v959, 0
        %v969 = vsel %vm712, %v964, 0
        %971 = vmatprep.subr.bf16.mxu0 0
        %972 = vmatpush1.bf16.xpose.msra.mxu0 %v969
        %973 = vmatprep.subr.bf16.mxu0 0
        %974 = vmatpush1.bf16.xpose.msra.mxu0 0
        %975 = vmatprep.subr.bf16.mxu0 0
        %976 = vmatpush1.bf16.xpose.msra.mxu0 0
        %977 = vmatprep.subr.bf16.mxu0 0
        %978 = vmatpush1.bf16.xpose.msra.mxu0 0
        %979 = vmatprep.subr.bf16.mxu0 0
        %980 = vmatpush1.bf16.xpose.msra.mxu0 0
        %981 = vmatprep.subr.bf16.mxu0 0
        %982 = vmatpush1.bf16.xpose.msra.mxu0 0
        %983 = vmatprep.subr.bf16.mxu0 0
        %984 = vmatpush1.bf16.xpose.msra.mxu0 0
        %985 = vmatprep.subr.bf16.mxu0 0
        %986 = vmatpush1.bf16.xpose.msra.mxu0 0
        %987 = vmatprep.subr.bf16.mxu0 0
        %988 = vmatpush1.bf16.xpose.msra.mxu0 0
        %989 = vmatprep.subr.bf16.mxu0 0
        %990 = vmatpush1.bf16.xpose.msra.mxu0 0
        %991 = vmatprep.subr.bf16.mxu0 0
        %992 = vmatpush1.bf16.xpose.msra.mxu0 0
        %993 = vmatprep.subr.bf16.mxu0 0
        %994 = vmatpush1.bf16.xpose.msra.mxu0 0
        %995 = vmatprep.subr.bf16.mxu0 0
        %996 = vmatpush1.bf16.xpose.msra.mxu0 0
        %997 = vmatprep.subr.bf16.mxu0 0
        %998 = vmatpush1.bf16.xpose.msra.mxu0 0
        %999 = vmatprep.subr.bf16.mxu0 0
        %1000 = vmatpush1.bf16.xpose.msra.mxu0 0
        %1001 = vmatprep.subr.bf16.mxu0 0
        %1002 = vmatpush1.bf16.xpose.msra.mxu0 0
        %1003 = vmatprep.mubr.bf16.mxu0 0
        %1004 = vmatmul.mubr.bf16.gmra.mrb[0].mxu0 %v966
        %v1005 = vpop.f32.mrb[0].mxu0
        %v1006 = vadd.f32 0.0, %v1005
        %v1007 = vpop.f32.mrb[0].mxu0
        %v1008 = vpop.f32.mrb[0].mxu0
        %v1009 = vpop.f32.mrb[0].mxu0
        %1010 = vdwg.mxu0
        %v1011 = vsel %vm761, -1e+18, %v1006
        %v1012 = vsel %vm712, %v1011, -inf
        %1013 = vmax.xlane.f32.xlu0 %v1012
        %v1014 = vpop.xlane.xlu0 %1013
        %v1015 = vsub.f32 %v1011, %v1014
        %v1016 = vmul.f32 %v1015, 1.442695
        %v1017 = vpow.pop %v1016
        %v1018 = vsel %vm712, %v1017, 0.0
        %1019 = vadd.xlane.f32.xlu0 %v1018
        %v1020 = vpop.xlane.xlu0 %1019
        %v1021 = vrcp.pop %v1020
        %v1022 = vmul.f32 %v1017, %v1021
        %v1023 = vpack.c.bf16 %v1022, %v1022
        %v1024 = vld [vmem:[#allocation4] sm:$0xf]
        %v1026 = vunpack.c.l.b16 %v1024
        %v1027 = vpack.c.b16 %v1026, %v1026
        %1028 = vrot.lane.b32.xlu0 %v1027, 112
        %v1029 = vpop.permute.xlu0 %1028
        %v1031 = vsel %vm712, %v1023, 0
        %v1034 = vsel %vm779, %v1029, 0
        %1036 = vmatprep.subr.bf16.mxu0 0
        %1037 = vmatpush1.bf16.msra.mxu0 %v1034
        %1038 = vmatprep.subr.bf16.mxu0 0
        %1039 = vmatpush1.bf16.msra.mxu0 0
        %1040 = vmatprep.subr.bf16.mxu0 0
        %1041 = vmatpush1.bf16.msra.mxu0 0
        %1042 = vmatprep.subr.bf16.mxu0 0
        %1043 = vmatpush1.bf16.msra.mxu0 0
        %1044 = vmatprep.subr.bf16.mxu0 0
        %1045 = vmatpush1.bf16.msra.mxu0 0
        %1046 = vmatprep.subr.bf16.mxu0 0
        %1047 = vmatpush1.bf16.msra.mxu0 0
        %1048 = vmatprep.subr.bf16.mxu0 0
        %1049 = vmatpush1.bf16.msra.mxu0 0
        %1050 = vmatprep.subr.bf16.mxu0 0
        %1051 = vmatpush1.bf16.msra.mxu0 0
        %1052 = vmatprep.subr.bf16.mxu0 0
        %1053 = vmatpush1.bf16.msra.mxu0 0
        %1054 = vmatprep.subr.bf16.mxu0 0
        %1055 = vmatpush1.bf16.msra.mxu0 0
        %1056 = vmatprep.subr.bf16.mxu0 0
        %1057 = vmatpush1.bf16.msra.mxu0 0
        %1058 = vmatprep.subr.bf16.mxu0 0
        %1059 = vmatpush1.bf16.msra.mxu0 0
        %1060 = vmatprep.subr.bf16.mxu0 0
        %1061 = vmatpush1.bf16.msra.mxu0 0
        %1062 = vmatprep.subr.bf16.mxu0 0
        %1063 = vmatpush1.bf16.msra.mxu0 0
        %1064 = vmatprep.subr.bf16.mxu0 0
        %1065 = vmatpush1.bf16.msra.mxu0 0
        %1066 = vmatprep.subr.bf16.mxu0 0
        %1067 = vmatpush1.bf16.msra.mxu0 0
        %1068 = vmatprep.mubr.bf16.mxu0 0
        %1069 = vmatmul.mubr.bf16.gmra.mrb[0].mxu0 %v1031
        %v1070 = vpop.f32.mrb[0].mxu0
        %v1071 = vadd.f32 0.0, %v1070
        %v1072 = vpop.f32.mrb[0].mxu0
        %v1073 = vpop.f32.mrb[0].mxu0
        %v1074 = vpop.f32.mrb[0].mxu0
        %1075 = vdwg.mxu0
        %v1076 = vpack.c.bf16 %v1071, %v1071
        %v1078 = vunpack.c.l.b16 %v1076
        %v1079 = vpack.c.b16 %v1078, %v1078
        %1080 = vrot.lane.b32.xlu0 %v1079, 16
        %v1081 = vpop.permute.xlu0 %1080
        %vm1083 = vcmask 191616
        %1084 = vst.msk [vmem:[#allocation5] sm:$0xf] %vm1083, %v1081
        %v1085 = vld [vmem:[#allocation3] sm:$0xf]
        %1086 = vrot.lane.b32.xlu0 %v829, 104
        %v1087 = vpop.permute.xlu0 %1086
        %v1089 = vunpack.c.l.b16 %v1085
        %v1090 = vpack.c.b16 %v1089, %v1089
        %1091 = vrot.lane.b32.xlu0 %v1090, 104
        %v1092 = vpop.permute.xlu0 %1091
        %v1094 = vsel %vm712, %v1087, 0
        %v1097 = vsel %vm712, %v1092, 0
        %1099 = vmatprep.subr.bf16.mxu0 0
        %1100 = vmatpush1.bf16.xpose.msra.mxu0 %v1097
        %1101 = vmatprep.subr.bf16.mxu0 0
        %1102 = vmatpush1.bf16.xpose.msra.mxu0 0
        %1103 = vmatprep.subr.bf16.mxu0 0
        %1104 = vmatpush1.bf16.xpose.msra.mxu0 0
        %1105 = vmatprep.subr.bf16.mxu0 0
        %1106 = vmatpush1.bf16.xpose.msra.mxu0 0
        %1107 = vmatprep.subr.bf16.mxu0 0
        %1108 = vmatpush1.bf16.xpose.msra.mxu0 0
        %1109 = vmatprep.subr.bf16.mxu0 0
        %1110 = vmatpush1.bf16.xpose.msra.mxu0 0
        %1111 = vmatprep.subr.bf16.mxu0 0
        %1112 = vmatpush1.bf16.xpose.msra.mxu0 0
        %1113 = vmatprep.subr.bf16.mxu0 0
        %1114 = vmatpush1.bf16.xpose.msra.mxu0 0
        %1115 = vmatprep.subr.bf16.mxu0 0
        %1116 = vmatpush1.bf16.xpose.msra.mxu0 0
        %1117 = vmatprep.subr.bf16.mxu0 0
        %1118 = vmatpush1.bf16.xpose.msra.mxu0 0
        %1119 = vmatprep.subr.bf16.mxu0 0
        %1120 = vmatpush1.bf16.xpose.msra.mxu0 0
        %1121 = vmatprep.subr.bf16.mxu0 0
        %1122 = vmatpush1.bf16.xpose.msra.mxu0 0
        %1123 = vmatprep.subr.bf16.mxu0 0
        %1124 = vmatpush1.bf16.xpose.msra.mxu0 0
        %1125 = vmatprep.subr.bf16.mxu0 0
        %1126 = vmatpush1.bf16.xpose.msra.mxu0 0
        %1127 = vmatprep.subr.bf16.mxu0 0
        %1128 = vmatpush1.bf16.xpose.msra.mxu0 0
        %1129 = vmatprep.subr.bf16.mxu0 0
        %1130 = vmatpush1.bf16.xpose.msra.mxu0 0
        %1131 = vmatprep.mubr.bf16.mxu0 0
        %1132 = vmatmul.mubr.bf16.gmra.mrb[0].mxu0 %v1094
        %v1133 = vpop.f32.mrb[0].mxu0
        %v1134 = vadd.f32 0.0, %v1133
        %v1135 = vpop.f32.mrb[0].mxu0
        %v1136 = vpop.f32.mrb[0].mxu0
        %v1137 = vpop.f32.mrb[0].mxu0
        %1138 = vdwg.mxu0
        %v1139 = vsel %vm761, -1e+18, %v1134
        %v1140 = vsel %vm712, %v1139, -inf
        %1141 = vmax.xlane.f32.xlu0 %v1140
        %v1142 = vpop.xlane.xlu0 %1141
        %v1143 = vsub.f32 %v1139, %v1142
        %v1144 = vmul.f32 %v1143, 1.442695
        %v1145 = vpow.pop %v1144
        %v1146 = vsel %vm712, %v1145, 0.0
        %1147 = vadd.xlane.f32.xlu0 %v1146
        %v1148 = vpop.xlane.xlu0 %1147
        %v1149 = vrcp.pop %v1148
        %v1150 = vmul.f32 %v1145, %v1149
        %v1151 = vpack.c.bf16 %v1150, %v1150
        %v1152 = vld [vmem:[#allocation4] sm:$0xf]
        %v1154 = vunpack.c.l.b16 %v1152
        %v1155 = vpack.c.b16 %v1154, %v1154
        %1156 = vrot.lane.b32.xlu0 %v1155, 104
        %v1157 = vpop.permute.xlu0 %1156
        %v1159 = vsel %vm712, %v1151, 0
        %v1162 = vsel %vm779, %v1157, 0
        %1164 = vmatprep.subr.bf16.mxu0 0
        %1165 = vmatpush1.bf16.msra.mxu0 %v1162
        %1166 = vmatprep.subr.bf16.mxu0 0
        %1167 = vmatpush1.bf16.msra.mxu0 0
        %1168 = vmatprep.subr.bf16.mxu0 0
        %1169 = vmatpush1.bf16.msra.mxu0 0
        %1170 = vmatprep.subr.bf16.mxu0 0
        %1171 = vmatpush1.bf16.msra.mxu0 0
        %1172 = vmatprep.subr.bf16.mxu0 0
        %1173 = vmatpush1.bf16.msra.mxu0 0
        %1174 = vmatprep.subr.bf16.mxu0 0
        %1175 = vmatpush1.bf16.msra.mxu0 0
        %1176 = vmatprep.subr.bf16.mxu0 0
        %1177 = vmatpush1.bf16.msra.mxu0 0
        %1178 = vmatprep.subr.bf16.mxu0 0
        %1179 = vmatpush1.bf16.msra.mxu0 0
        %1180 = vmatprep.subr.bf16.mxu0 0
        %1181 = vmatpush1.bf16.msra.mxu0 0
        %1182 = vmatprep.subr.bf16.mxu0 0
        %1183 = vmatpush1.bf16.msra.mxu0 0
        %1184 = vmatprep.subr.bf16.mxu0 0
        %1185 = vmatpush1.bf16.msra.mxu0 0
        %1186 = vmatprep.subr.bf16.mxu0 0
        %1187 = vmatpush1.bf16.msra.mxu0 0
        %1188 = vmatprep.subr.bf16.mxu0 0
        %1189 = vmatpush1.bf16.msra.mxu0 0
        %1190 = vmatprep.subr.bf16.mxu0 0
        %1191 = vmatpush1.bf16.msra.mxu0 0
        %1192 = vmatprep.subr.bf16.mxu0 0
        %1193 = vmatpush1.bf16.msra.mxu0 0
        %1194 = vmatprep.subr.bf16.mxu0 0
        %1195 = vmatpush1.bf16.msra.mxu0 0
        %1196 = vmatprep.mubr.bf16.mxu0 0
        %1197 = vmatmul.mubr.bf16.gmra.mrb[0].mxu0 %v1159
        %v1198 = vpop.f32.mrb[0].mxu0
        %v1199 = vadd.f32 0.0, %v1198
        %v1200 = vpop.f32.mrb[0].mxu0
        %v1201 = vpop.f32.mrb[0].mxu0
        %v1202 = vpop.f32.mrb[0].mxu0
        %1203 = vdwg.mxu0
        %v1204 = vpack.c.bf16 %v1199, %v1199
        %v1206 = vunpack.c.l.b16 %v1204
        %v1207 = vpack.c.b16 %v1206, %v1206
        %1208 = vrot.lane.b32.xlu0 %v1207, 24
        %v1209 = vpop.permute.xlu0 %1208
        %vm1211 = vcmask 257216
        %1212 = vst.msk [vmem:[#allocation5] sm:$0xf] %vm1211, %v1209
        %v1213 = vld [vmem:[#allocation5] sm:$0xf]
        %v1214 = vld [vmem:[#allocation9] sm:$0xf]
        %v1215 = vld [vmem:[#allocation9 + $0x4] sm:$0xf]
        %v1216 = vld [vmem:[#allocation9 + $0x8] sm:$0xf]
        %v1217 = vld [vmem:[#allocation9 + $0xc] sm:$0xf]
        %v1218 = vld [vmem:[%s6] sm:$0x1]
        %v1220 = vlaneseq
        %v1221 = vshrl.u32 %v1220, 7
        %v1222 = vsub.s32 0, %v1221
        %v1223 = vrot.slane %v1218, %v1222
        %v1229 = vunpack.c.l.b16 %v1214
        %v1230 = vunpack.c.l.b16 %v1215
        %v1231 = vunpack.c.l.b16 %v1216
        %v1232 = vunpack.c.l.b16 %v1217
        %v1233 = vpack.c.b16 %v1230, %v1229
        %v1234 = vpack.c.b16 %v1232, %v1231
        %vm1237 = vcmask 261120
        %v1239 = vsel %vm1237, %v1213, 0
        %1241 = vmatprep.subr.bf16.mxu0 0
        %1242 = vmatpush1.bf16.msra.mxu0 %v1233
        %1243 = vmatprep.subr.bf16.mxu0 0
        %1244 = vmatpush1.bf16.msra.mxu0 %v1234
        %1245 = vmatprep.subr.bf16.mxu0 0
        %1246 = vmatpush1.bf16.msra.mxu0 0
        %1247 = vmatprep.subr.bf16.mxu0 0
        %1248 = vmatpush1.bf16.msra.mxu0 0
        %1249 = vmatprep.subr.bf16.mxu0 0
        %1250 = vmatpush1.bf16.msra.mxu0 0
        %1251 = vmatprep.subr.bf16.mxu0 0
        %1252 = vmatpush1.bf16.msra.mxu0 0
        %1253 = vmatprep.subr.bf16.mxu0 0
        %1254 = vmatpush1.bf16.msra.mxu0 0
        %1255 = vmatprep.subr.bf16.mxu0 0
        %1256 = vmatpush1.bf16.msra.mxu0 0
        %1257 = vmatprep.subr.bf16.mxu0 0
        %1258 = vmatpush1.bf16.msra.mxu0 0
        %1259 = vmatprep.subr.bf16.mxu0 0
        %1260 = vmatpush1.bf16.msra.mxu0 0
        %1261 = vmatprep.subr.bf16.mxu0 0
        %1262 = vmatpush1.bf16.msra.mxu0 0
        %1263 = vmatprep.subr.bf16.mxu0 0
        %1264 = vmatpush1.bf16.msra.mxu0 0
        %1265 = vmatprep.subr.bf16.mxu0 0
        %1266 = vmatpush1.bf16.msra.mxu0 0
        %1267 = vmatprep.subr.bf16.mxu0 0
        %1268 = vmatpush1.bf16.msra.mxu0 0
        %1269 = vmatprep.subr.bf16.mxu0 0
        %1270 = vmatpush1.bf16.msra.mxu0 0
        %1271 = vmatprep.subr.bf16.mxu0 0
        %1272 = vmatpush1.bf16.msra.mxu0 0
        %1273 = vmatprep.mubr.bf16.mxu0 0
        %1274 = vmatmul.mubr.bf16.gmra.mrb[0].mxu0 %v1239
        %v1275 = vpop.f32.mrb[0].mxu0
        %v1276 = vadd.f32 %v1223, %v1275
        %v1277 = vpop.f32.mrb[0].mxu0
        %v1278 = vpop.f32.mrb[0].mxu0
        %v1279 = vpop.f32.mrb[0].mxu0
        %1280 = vdwg.mxu0
        %v1281 = vadd.f32 %v1276, %v703
        %v1282 = vld [vmem:[#allocation11] sm:$0x1]
        %v1283 = vld [vmem:[#allocation12] sm:$0x1]
        %v1284 = vsel %vm1237, %v1281, 0.0
        %1285 = vadd.xlane.f32.xlu0 %v1284
        %v1286 = vpop.xlane.xlu0 %1285
        %v1287 = vrcp.pop 32.0
        %v1288 = vmul.f32 %v1286, %v1287
        %v1289 = vsub.f32 %v1281, %v1288
        %v1290 = vmul.f32 %v1289, %v1289
        %v1291 = vsel %vm1237, %v1290, 0.0
        %1292 = vadd.xlane.f32.xlu0 %v1291
        %v1293 = vpop.xlane.xlu0 %1292
        %v1294 = vmul.f32 %v1293, 0.032258064
        %v1295 = vrsqrt.pop %v1294
        %v1296 = vmul.f32 %v1294, %v1295
        %vm1297 = vcmp.eq.f32.partialorder %v1294, inf
        %v1298 = vsel %vm1297, %v1294, %v1296
        %vm1299 = vcmp.eq.f32.partialorder %v1294, 0.0
        %v1300 = vand.u32 %v1294, 2147483648
        %v1301 = vsel %vm1299, %v1300, %v1298
        %v1302 = vadd.f32 %v1301, 1e-06
        %v1303 = vrcp.pop %v1302
        %v1305 = vlaneseq
        %v1306 = vshrl.u32 %v1305, 7
        %v1307 = vsub.s32 0, %v1306
        %v1308 = vrot.slane %v1282, %v1307
        %v1310 = vmul.f32 %v1308, %v1289
        %v1311 = vmul.f32 %v1310, %v1303
        %v1313 = vlaneseq
        %v1314 = vshrl.u32 %v1313, 7
        %v1315 = vsub.s32 0, %v1314
        %v1316 = vrot.slane %v1283, %v1315
        %v1318 = vadd.f32 %v1311, %v1316
        %v1319 = vpack.c.bf16 %v1318, %v1318
        %v1320 = vld [vmem:[%s9] sm:$0xf]
        %v1321 = vld [vmem:[%s9 + $0x4] sm:$0xf]
        %v1322 = vld [vmem:[%s9 + $0x8] sm:$0xf]
        %v1323 = vld [vmem:[%s9 + $0xc] sm:$0xf]
        %v1324 = vld [vmem:[%s10] sm:$0x1]
        %v1326 = vlaneseq
        %v1327 = vshrl.u32 %v1326, 7
        %v1328 = vsub.s32 0, %v1327
        %v1329 = vrot.slane %v1324, %v1328
        %v1335 = vunpack.c.l.b16 %v1320
        %v1336 = vunpack.c.l.b16 %v1321
        %v1337 = vunpack.c.l.b16 %v1322
        %v1338 = vunpack.c.l.b16 %v1323
        %v1339 = vpack.c.b16 %v1336, %v1335
        %v1340 = vpack.c.b16 %v1338, %v1337
        %v1344 = vsel %vm1237, %v1319, 0
        %1346 = vmatprep.subr.bf16.mxu0 0
        %1347 = vmatpush1.bf16.msra.mxu0 %v1339
        %1348 = vmatprep.subr.bf16.mxu0 0
        %1349 = vmatpush1.bf16.msra.mxu0 %v1340
        %1350 = vmatprep.subr.bf16.mxu0 0
        %1351 = vmatpush1.bf16.msra.mxu0 0
        %1352 = vmatprep.subr.bf16.mxu0 0
        %1353 = vmatpush1.bf16.msra.mxu0 0
        %1354 = vmatprep.subr.bf16.mxu0 0
        %1355 = vmatpush1.bf16.msra.mxu0 0
        %1356 = vmatprep.subr.bf16.mxu0 0
        %1357 = vmatpush1.bf16.msra.mxu0 0
        %1358 = vmatprep.subr.bf16.mxu0 0
        %1359 = vmatpush1.bf16.msra.mxu0 0
        %1360 = vmatprep.subr.bf16.mxu0 0
        %1361 = vmatpush1.bf16.msra.mxu0 0
        %1362 = vmatprep.subr.bf16.mxu0 0
        %1363 = vmatpush1.bf16.msra.mxu0 0
        %1364 = vmatprep.subr.bf16.mxu0 0
        %1365 = vmatpush1.bf16.msra.mxu0 0
        %1366 = vmatprep.subr.bf16.mxu0 0
        %1367 = vmatpush1.bf16.msra.mxu0 0
        %1368 = vmatprep.subr.bf16.mxu0 0
        %1369 = vmatpush1.bf16.msra.mxu0 0
        %1370 = vmatprep.subr.bf16.mxu0 0
        %1371 = vmatpush1.bf16.msra.mxu0 0
        %1372 = vmatprep.subr.bf16.mxu0 0
        %1373 = vmatpush1.bf16.msra.mxu0 0
        %1374 = vmatprep.subr.bf16.mxu0 0
        %1375 = vmatpush1.bf16.msra.mxu0 0
        %1376 = vmatprep.subr.bf16.mxu0 0
        %1377 = vmatpush1.bf16.msra.mxu0 0
        %1378 = vmatprep.mubr.bf16.mxu0 0
        %1379 = vmatmul.mubr.bf16.gmra.mrb[0].mxu0 %v1344
        %v1380 = vpop.f32.mrb[0].mxu0
        %v1381 = vadd.f32 %v1329, %v1380
        %v1382 = vpop.f32.mrb[0].mxu0
        %v1383 = vpop.f32.mrb[0].mxu0
        %v1384 = vpop.f32.mrb[0].mxu0
        %1385 = vdwg.mxu0
        %v1386 = vmax.f32 %v1381, 0.0
        %v1387 = vpack.c.bf16 %v1386, %v1386
        %v1388 = vld [vmem:[%s11] sm:$0xf]
        %v1389 = vld [vmem:[%s11 + $0x4] sm:$0xf]
        %v1390 = vld [vmem:[%s11 + $0x8] sm:$0xf]
        %v1391 = vld [vmem:[%s11 + $0xc] sm:$0xf]
        %v1392 = vld [vmem:[%s11 + $0x10] sm:$0xf]
        %v1393 = vld [vmem:[%s11 + $0x14] sm:$0xf]
        %v1394 = vld [vmem:[%s11 + $0x18] sm:$0xf]
        %v1395 = vld [vmem:[%s11 + $0x1c] sm:$0xf]
        %v1396 = vld [vmem:[%s12] sm:$0x1]
        %v1398 = vlaneseq
        %v1399 = vshrl.u32 %v1398, 7
        %v1400 = vsub.s32 0, %v1399
        %v1401 = vrot.slane %v1396, %v1400
        %v1411 = vunpack.c.l.b16 %v1388
        %v1412 = vunpack.c.l.b16 %v1389
        %v1413 = vunpack.c.l.b16 %v1390
        %v1414 = vunpack.c.l.b16 %v1391
        %v1415 = vunpack.c.l.b16 %v1392
        %v1416 = vunpack.c.l.b16 %v1393
        %v1417 = vunpack.c.l.b16 %v1394
        %v1418 = vunpack.c.l.b16 %v1395
        %v1419 = vpack.c.b16 %v1412, %v1411
        %v1420 = vpack.c.b16 %v1414, %v1413
        %v1421 = vpack.c.b16 %v1416, %v1415
        %v1422 = vpack.c.b16 %v1418, %v1417
        %vm1427 = vcmask 523264
        %v1429 = vsel %vm1427, %v1387, 0
        %1431 = vmatprep.subr.bf16.mxu0 0
        %1432 = vmatpush1.bf16.msra.mxu0 %v1419
        %1433 = vmatprep.subr.bf16.mxu0 0
        %1434 = vmatpush1.bf16.msra.mxu0 %v1420
        %1435 = vmatprep.subr.bf16.mxu0 0
        %1436 = vmatpush1.bf16.msra.mxu0 %v1421
        %1437 = vmatprep.subr.bf16.mxu0 0
        %1438 = vmatpush1.bf16.msra.mxu0 %v1422
        %1439 = vmatprep.subr.bf16.mxu0 0
        %1440 = vmatpush1.bf16.msra.mxu0 0
        %1441 = vmatprep.subr.bf16.mxu0 0
        %1442 = vmatpush1.bf16.msra.mxu0 0
        %1443 = vmatprep.subr.bf16.mxu0 0
        %1444 = vmatpush1.bf16.msra.mxu0 0
        %1445 = vmatprep.subr.bf16.mxu0 0
        %1446 = vmatpush1.bf16.msra.mxu0 0
        %1447 = vmatprep.subr.bf16.mxu0 0
        %1448 = vmatpush1.bf16.msra.mxu0 0
        %1449 = vmatprep.subr.bf16.mxu0 0
        %1450 = vmatpush1.bf16.msra.mxu0 0
        %1451 = vmatprep.subr.bf16.mxu0 0
        %1452 = vmatpush1.bf16.msra.mxu0 0
        %1453 = vmatprep.subr.bf16.mxu0 0
        %1454 = vmatpush1.bf16.msra.mxu0 0
        %1455 = vmatprep.subr.bf16.mxu0 0
        %1456 = vmatpush1.bf16.msra.mxu0 0
        %1457 = vmatprep.subr.bf16.mxu0 0
        %1458 = vmatpush1.bf16.msra.mxu0 0
        %1459 = vmatprep.subr.bf16.mxu0 0
        %1460 = vmatpush1.bf16.msra.mxu0 0
        %1461 = vmatprep.subr.bf16.mxu0 0
        %1462 = vmatpush1.bf16.msra.mxu0 0
        %1463 = vmatprep.mubr.bf16.mxu0 0
        %1464 = vmatmul.mubr.bf16.gmra.mrb[0].mxu0 %v1429
        %v1465 = vpop.f32.mrb[0].mxu0
        %v1466 = vadd.f32 %v1401, %v1465
        %v1467 = vpop.f32.mrb[0].mxu0
        %v1468 = vpop.f32.mrb[0].mxu0
        %v1469 = vpop.f32.mrb[0].mxu0
        %1470 = vdwg.mxu0
        %v1471 = vadd.f32 %v1466, %v1318
        %v1472 = vld [vmem:[%s13] sm:$0x1]
        %v1473 = vld [vmem:[%s14] sm:$0x1]
        %v1474 = vsel %vm1237, %v1471, 0.0
        %1475 = vadd.xlane.f32.xlu0 %v1474
        %v1476 = vpop.xlane.xlu0 %1475
        %v1477 = vmul.f32 %v1476, %v1287
        %v1478 = vsub.f32 %v1471, %v1477
        %v1479 = vmul.f32 %v1478, %v1478
        %v1480 = vsel %vm1237, %v1479, 0.0
        %1481 = vadd.xlane.f32.xlu0 %v1480
        %v1482 = vpop.xlane.xlu0 %1481
        %v1483 = vmul.f32 %v1482, 0.032258064
        %v1484 = vrsqrt.pop %v1483
        %v1485 = vmul.f32 %v1483, %v1484
        %vm1486 = vcmp.eq.f32.partialorder %v1483, inf
        %v1487 = vsel %vm1486, %v1483, %v1485
        %vm1488 = vcmp.eq.f32.partialorder %v1483, 0.0
        %v1489 = vand.u32 %v1483, 2147483648
        %v1490 = vsel %vm1488, %v1489, %v1487
        %v1491 = vadd.f32 %v1490, 1e-06
        %v1492 = vrcp.pop %v1491
        %v1494 = vlaneseq
        %v1495 = vshrl.u32 %v1494, 7
        %v1496 = vsub.s32 0, %v1495
        %v1497 = vrot.slane %v1472, %v1496
        %v1499 = vmul.f32 %v1497, %v1478
        %v1500 = vmul.f32 %v1499, %v1492
        %v1502 = vlaneseq
        %v1503 = vshrl.u32 %v1502, 7
        %v1504 = vsub.s32 0, %v1503
        %v1505 = vrot.slane %v1473, %v1504
        %v1507 = vadd.f32 %v1500, %v1505
        %1508 = vst.msk [vmem:[%s600] sm:$0xff] %vm1237, %v1507
        %s1509 = sand.u32 %s390, 1
        %s1510 = scalar_lea.sflag [#allocation8], %s1509
        %s1511 = sand.u32 %s390, 1
        %s1512 = smul.addr %s1511, 8
        %s1513 = scalar_lea.vmem [#allocation14], %s1512
        // Predicated region
        $region101: #{tpu_custom_call.1} parent=79 // pred_check
          %p1514 = pneg %p400
        $region102: #{tpu_custom_call.1} parent=79 // pred_check_branch
          %1516 = sbr.rel (%p1514) target = $region104
        $region103: #{tpu_custom_call.1} parent=79 // pred_region
          %s1518 = ssub.s32 128, 128
          %1519 = vsyncadd %s1510, %s1518
          %s1520 = sadd.s32 %s39, %s38
          %s1521 = smul.addr %s1520, 128
          %s1522 = scalar_lea.hbm %s15, %s1521
          %s1524 = sshll.u32 %s1513, 4
          %s1525 = int_to_ptr.vmem [resolvable:$true] %s1524
          %1527 = dma.vmem_to_hbm [thread:$0]  %s1525, 128, %s1522, %s1510
        $region104: #{tpu_custom_call.1} parent=79 // pred_fallthru
          _
      $region80: #{tpu_custom_call.1} parent=5 // pred_fallthru
        _
      %p1528 = scmp.le.s32.totalorder 2, %s29
      // Predicated region
      $region105: #{tpu_custom_call.1} parent=5 // pred_check
        %p1529 = pneg %p1528
      $region106: #{tpu_custom_call.1} parent=5 // pred_check_branch
        %1531 = sbr.rel (%p1529) target = $region108
      $region107: #{tpu_custom_call.1} parent=5 // pred_region
        %s1532 = ssub.s32 %s29, 2
        // Predicated region
        $region109: #{tpu_custom_call.1} parent=107 // pred_check
          %p1533 = pneg %p406
        $region110: #{tpu_custom_call.1} parent=107 // pred_check_branch
          %1535 = sbr.rel (%p1533) target = $region112
        $region111: #{tpu_custom_call.1} parent=107 // pred_region
          %s1536 = sand.u32 %s391, 1
          %s1537 = scalar_lea.sflag [#allocation8], %s1536
          %s1538 = sand.u32 %s391, 1
          %s1539 = smul.addr %s1538, 8
          %s1540 = scalar_lea.vmem [#allocation14], %s1539
          %1541 = dma.done %s1537, 128
        $region112: #{tpu_custom_call.1} parent=107 // pred_fallthru
          _
      $region108: #{tpu_custom_call.1} parent=5 // pred_fallthru
        _
    $region6: #{tpu_custom_call.1} parent=1 // loop_footer
      %s33 = sadd.s32 1, %s29
    $region7: #{tpu_custom_call.1} parent=1 // loop_footer_branch
      %28 = sbr.rel target = $region3
    $region8: #{tpu_custom_call.1} parent=1 // loop_exit
      _
    %1542 = vsyncpa [#allocation7], 1
    %s1543 = scalar_lea.sflag [#allocation7], 1
    %1544 = vsyncpa %s1543, 1
    %1545 = vsyncpa [#allocation10], 1
    %1546 = vsyncpa [#allocation13], 1
    %1547 = vsyncpa [#allocation8], 1
    %s1548 = scalar_lea.sflag [#allocation8], 1
    %1549 = vsyncpa %s1548, 1

</llo_original>
